<compile_context>
chip_gen: v6e
topology: v6e:2x2x1
jax: 0.10.0
libtpu: 0.0.40
codegen_flags: <defaults>
</compile_context>

<pallas_src>
import functools

import jax
import jax.numpy as jnp
from jax.experimental import pallas as pl
from jax.experimental.pallas import tpu as pltpu

# ---------------- problem sizes (small, consistent with the module) ----------
B, C, H, W = 2, 4, 16, 16          # input images
D = C * H * W                      # flattened feature dim = 1024
HID = 128                          # hidden width of encoder / decoder MLPs
LAT = 32                           # latent_dim (dec_linear in_features)
BETA = 4.0                         # beta weight on the KL term

MAX_TILE_B = 256                   # batch tile: full MXU rows on v6e/v7x (use 128 on v5e)


def _beta_vae_kernel(x_ref,
                     we1_ref, be1_ref,
                     we2_ref, be2_ref,
                     wd1_ref, bd1_ref,
                     wd2_ref, bd2_ref,
                     part_ref,
                     *, beta, batch, latent):
    tb = x_ref.shape[0]                                       # batch-tile rows (mult of 8)

    # ---- encoder (MXU operands in bf16, elementwise math in f32) ------------
    x = x_ref[...]                                            # [TB, D] f32; padded rows are 0
    xb = x.astype(jnp.bfloat16)

    h = jnp.dot(xb, we1_ref[...], preferred_element_type=jnp.float32)
    h = jnp.maximum(h + be1_ref[...], 0.0)                    # ReLU, f32
    hb = h.astype(jnp.bfloat16)

    # fused encoder head: lanes [0, LAT) = mu, lanes [LAT, 2*LAT) = log_std
    fused = jnp.dot(hb, we2_ref[...],
                    preferred_element_type=jnp.float32) + be2_ref[...]   # [TB, 2*LAT]

    # ---- decoder -------------------------------------------------------------
    # eval mode: z = posterior.mean = mu. wd1 is zero-padded on the log_std
    # rows, so the fused tile feeds straight in (no lane slicing of mu).
    hd = jnp.dot(fused.astype(jnp.bfloat16), wd1_ref[...],
                 preferred_element_type=jnp.float32)
    hd = jnp.maximum(hd + bd1_ref[...], 0.0)                  # ReLU, f32
    logits = jnp.dot(hd.astype(jnp.bfloat16), wd2_ref[...],
                     preferred_element_type=jnp.float32)
    logits = logits + bd2_ref[...]                            # [TB, D]; sigmoid kept implicit

    # ---- valid-row mask (padded batch rows excluded from both losses) -------
    row_ids = (jax.lax.broadcasted_iota(jnp.int32, (tb, 1), 0)
               + pl.program_id(0) * tb)                       # global row index
    valid = row_ids < batch                                   # [TB, 1] bool

    # ---- KL( N(mu, exp(log_std)) || N(0, I) ), sum over latent dims ---------
    # computed directly on the fused tile with a lane select:
    #   mu lanes      -> 0.5 * mu^2
    #   log_std lanes -> 0.5 * (exp(2*log_std) - 1 - 2*log_std)
    lane = jax.lax.broadcasted_iota(jnp.int32, fused.shape, 1)
    kl_elem = jnp.where(lane < latent,
                        0.5 * fused * fused,
                        0.5 * (jnp.exp(2.0 * fused) - 1.0 - 2.0 * fused))
    kld_row = jnp.sum(kl_elem, axis=-1, keepdims=True)        # [TB, 1]
    kld_sum = jnp.sum(jnp.where(valid, kld_row, 0.0))

    # ---- BCE(sigmoid(logits), x), reduction='sum' ----------------------------
    # logit-space identity (BCEWithLogits):
    #   bce = max(l, 0) - l*x + log(1 + exp(-|l|))
    bce = (jnp.maximum(logits, 0.0) - logits * x
           + jnp.log(1.0 + jnp.exp(-jnp.abs(logits))))
    bce_row = jnp.sum(bce, axis=-1, keepdims=True)            # [TB, 1]
    bce_sum = jnp.sum(jnp.where(valid, bce_row, 0.0))

    # per-tile partial (both terms are divided by the true batch size outside)
    part_ref[0, 0] = beta * kld_sum + bce_sum


def beta_vae_loss(x_nchw, params, *, beta=BETA, max_tile_b=MAX_TILE_B):
    """x_nchw: [B, C, H, W] float32 in [0,1]. Returns scalar loss."""
    b = x_nchw.shape[0]
    x_flat = x_nchw.reshape(b, -1).astype(jnp.float32)        # NCHW flatten
    d = x_flat.shape[1]

    # batch tile: multiple of 8 sublanes, capped at max_tile_b
    tile_b = min(max_tile_b, ((b + 7) // 8) * 8)
    num_tiles = pl.cdiv(b, tile_b)
    pad_b = num_tiles * tile_b
    if pad_b != b:
        x_flat = jnp.pad(x_flat, ((0, pad_b - b), (0, 0)))

    kernel = functools.partial(_beta_vae_kernel, beta=beta, batch=b, latent=LAT)

    # weights/biases: whole array as one block, constant index_map -> single
    # HBM->VMEM fetch per call (Pallas revisits the same block across the grid)
    def const_spec(arr):
        return pl.BlockSpec(arr.shape, lambda i: (0, 0))

    in_specs = [pl.BlockSpec((tile_b, d), lambda i: (i, 0))]  # batch-tiled input
    in_specs += [const_spec(p) for p in params]

    partials = pl.pallas_call(
        kernel,
        grid=(num_tiles,),
        in_specs=in_specs,
        # one scalar partial per batch tile, written via SMEM (no masked vst)
        out_specs=pl.BlockSpec((1, 1), lambda i: (i, 0),
                               memory_space=pltpu.MemorySpace.SMEM),
        out_shape=jax.ShapeDtypeStruct((num_tiles, 1), jnp.float32),
        compiler_params=pltpu.CompilerParams(
            dimension_semantics=("parallel",)),   # v7x: split tiles across both TCs
    )(x_flat, *params)

    return jnp.sum(partials) / b


def init_params(key):
    """Glorot-ish init. Weight matrices stored as bf16 (MXU-native, half DMA);
    biases stay float32 (all elementwise math is f32)."""
    ks = jax.random.split(key, 5)

    def dense(k, fan_in, fan_out):
        scale = jnp.sqrt(2.0 / (fan_in + fan_out)).astype(jnp.float32)
        w = (scale * jax.random.normal(k, (fan_in, fan_out), dtype=jnp.float32)
             ).astype(jnp.bfloat16)
        bias = jnp.zeros((1, fan_out), dtype=jnp.float32)
        return w, bias

    we1, be1 = dense(ks[0], D, HID)            # encoder layer 1
    w_mu, b_mu = dense(ks[1], HID, LAT)        # encoder -> mu
    w_ls, b_ls = dense(ks[2], HID, LAT)        # encoder -> log_std
    # fused head: [HID, 2*LAT] = [mu | log_std]
    we2 = jnp.concatenate([w_mu, w_ls], axis=1)
    be2 = jnp.concatenate([b_mu, b_ls], axis=1)

    wd1, bd1 = dense(ks[3], LAT, HID)          # decoder layer 1
    # zero-pad to [2*LAT, HID]: log_std rows contribute nothing, so the fused
    # [mu | log_std] tile can be fed directly (eval-mode z = mu)
    wd1p = jnp.concatenate([wd1, jnp.zeros((LAT, HID), wd1.dtype)], axis=0)

    wd2, bd2 = dense(ks[4], HID, D)            # decoder -> logits (sigmoid folded into BCE)
    return (we1, be1, we2, be2, wd1p, bd1, wd2, bd2)


if __name__ == "__main__":
    key = jax.random.PRNGKey(0)
    k_x, k_p = jax.random.split(key)

    # images in [0,1] (required as BCE targets)
    x = jax.random.uniform(k_x, (B, C, H, W), dtype=jnp.float32)
    params = init_params(k_p)

    loss = beta_vae_loss(x, params)
    jax.block_until_ready(loss)

    assert jnp.isfinite(loss), "loss is not finite"
    print("KERNEL_OK")
</pallas_src>

<mosaic_0001>
module attributes {stable_mosaic.version = 11 : i64} {
  func.func @_beta_vae_kernel(%arg0: i32, %arg1: memref<8x1024xf32, #tpu.memory_space<vmem>>, %arg2: memref<1024x128xbf16, #tpu.memory_space<vmem>>, %arg3: memref<1x128xf32, #tpu.memory_space<vmem>>, %arg4: memref<128x64xbf16, #tpu.memory_space<vmem>>, %arg5: memref<1x64xf32, #tpu.memory_space<vmem>>, %arg6: memref<64x128xbf16, #tpu.memory_space<vmem>>, %arg7: memref<1x128xf32, #tpu.memory_space<vmem>>, %arg8: memref<128x1024xbf16, #tpu.memory_space<vmem>>, %arg9: memref<1x1024xf32, #tpu.memory_space<vmem>>, %arg10: memref<1x1xf32, #tpu.memory_space<smem>>) attributes {dimension_semantics = [#tpu.dimension_semantics<parallel>], iteration_bounds = array<i64: 1>, scalar_prefetch = 0 : i64, scratch_operands = 0 : i64, tpu.core_type = #tpu.core_type<tc>, window_params = [{transform_indices = @transform_0, window_bounds = array<i64: 8, 1024>}, {pipeline_mode = #tpu.pipeline_mode<synchronous>, transform_indices = @transform_1, window_bounds = array<i64: 1024, 128>}, {pipeline_mode = #tpu.pipeline_mode<synchronous>, transform_indices = @transform_2, window_bounds = array<i64: 1, 128>}, {pipeline_mode = #tpu.pipeline_mode<synchronous>, transform_indices = @transform_3, window_bounds = array<i64: 128, 64>}, {pipeline_mode = #tpu.pipeline_mode<synchronous>, transform_indices = @transform_4, window_bounds = array<i64: 1, 64>}, {pipeline_mode = #tpu.pipeline_mode<synchronous>, transform_indices = @transform_5, window_bounds = array<i64: 64, 128>}, {pipeline_mode = #tpu.pipeline_mode<synchronous>, transform_indices = @transform_6, window_bounds = array<i64: 1, 128>}, {pipeline_mode = #tpu.pipeline_mode<synchronous>, transform_indices = @transform_7, window_bounds = array<i64: 128, 1024>}, {pipeline_mode = #tpu.pipeline_mode<synchronous>, transform_indices = @transform_8, window_bounds = array<i64: 1, 1024>}, {transform_indices = @transform_9, window_bounds = array<i64: 1, 1>}]} {
    %c0 = arith.constant 0 : index
    %c0_0 = arith.constant 0 : index
    %0 = vector.load %arg1[%c0, %c0_0] : memref<8x1024xf32, #tpu.memory_space<vmem>>, vector<8x1024xf32>
    %1 = arith.truncf %0 : vector<8x1024xf32> to vector<8x1024xbf16>
    %c0_1 = arith.constant 0 : index
    %c0_2 = arith.constant 0 : index
    %2 = vector.load %arg2[%c0_1, %c0_2] : memref<1024x128xbf16, #tpu.memory_space<vmem>>, vector<1024x128xbf16>
    %cst = arith.constant dense<0.000000e+00> : vector<8x128xf32>
    %3 = tpu.matmul %1, %2, %cst {dimension_numbers = #tpu.dot_dimension_numbers<[1], [0], [0], [1], [0, 0, 1, 1], [], []>} : vector<8x1024xbf16>, vector<1024x128xbf16>, vector<8x128xf32> -> vector<8x128xf32>
    %c0_3 = arith.constant 0 : index
    %c0_4 = arith.constant 0 : index
    %4 = vector.load %arg3[%c0_3, %c0_4] : memref<1x128xf32, #tpu.memory_space<vmem>>, vector<1x128xf32>
    %5 = vector.broadcast %4 : vector<1x128xf32> to vector<8x128xf32>
    %6 = arith.addf %3, %5 : vector<8x128xf32>
    %cst_5 = arith.constant 0.000000e+00 : f32
    %7 = vector.broadcast %cst_5 : f32 to vector<8x128xf32>
    %8 = arith.maximumf %6, %7 : vector<8x128xf32>
    %9 = arith.truncf %8 : vector<8x128xf32> to vector<8x128xbf16>
    %c0_6 = arith.constant 0 : index
    %c0_7 = arith.constant 0 : index
    %10 = vector.load %arg4[%c0_6, %c0_7] : memref<128x64xbf16, #tpu.memory_space<vmem>>, vector<128x64xbf16>
    %cst_8 = arith.constant dense<0.000000e+00> : vector<8x64xf32>
    %11 = tpu.matmul %9, %10, %cst_8 {dimension_numbers = #tpu.dot_dimension_numbers<[1], [0], [0], [1], [0, 0, 1, 1], [], []>} : vector<8x128xbf16>, vector<128x64xbf16>, vector<8x64xf32> -> vector<8x64xf32>
    %c0_9 = arith.constant 0 : index
    %c0_10 = arith.constant 0 : index
    %12 = vector.load %arg5[%c0_9, %c0_10] : memref<1x64xf32, #tpu.memory_space<vmem>>, vector<1x64xf32>
    %13 = vector.broadcast %12 : vector<1x64xf32> to vector<8x64xf32>
    %14 = arith.addf %11, %13 : vector<8x64xf32>
    %15 = arith.truncf %14 : vector<8x64xf32> to vector<8x64xbf16>
    %c0_11 = arith.constant 0 : index
    %c0_12 = arith.constant 0 : index
    %16 = vector.load %arg6[%c0_11, %c0_12] : memref<64x128xbf16, #tpu.memory_space<vmem>>, vector<64x128xbf16>
    %cst_13 = arith.constant dense<0.000000e+00> : vector<8x128xf32>
    %17 = tpu.matmul %15, %16, %cst_13 {dimension_numbers = #tpu.dot_dimension_numbers<[1], [0], [0], [1], [0, 0, 1, 1], [], []>} : vector<8x64xbf16>, vector<64x128xbf16>, vector<8x128xf32> -> vector<8x128xf32>
    %c0_14 = arith.constant 0 : index
    %c0_15 = arith.constant 0 : index
    %18 = vector.load %arg7[%c0_14, %c0_15] : memref<1x128xf32, #tpu.memory_space<vmem>>, vector<1x128xf32>
    %19 = vector.broadcast %18 : vector<1x128xf32> to vector<8x128xf32>
    %20 = arith.addf %17, %19 : vector<8x128xf32>
    %cst_16 = arith.constant 0.000000e+00 : f32
    %21 = vector.broadcast %cst_16 : f32 to vector<8x128xf32>
    %22 = arith.maximumf %20, %21 : vector<8x128xf32>
    %23 = arith.truncf %22 : vector<8x128xf32> to vector<8x128xbf16>
    %c0_17 = arith.constant 0 : index
    %c0_18 = arith.constant 0 : index
    %24 = vector.load %arg8[%c0_17, %c0_18] : memref<128x1024xbf16, #tpu.memory_space<vmem>>, vector<128x1024xbf16>
    %cst_19 = arith.constant dense<0.000000e+00> : vector<8x1024xf32>
    %25 = tpu.matmul %23, %24, %cst_19 {dimension_numbers = #tpu.dot_dimension_numbers<[1], [0], [0], [1], [0, 0, 1, 1], [], []>} : vector<8x128xbf16>, vector<128x1024xbf16>, vector<8x1024xf32> -> vector<8x1024xf32>
    %c0_20 = arith.constant 0 : index
    %c0_21 = arith.constant 0 : index
    %26 = vector.load %arg9[%c0_20, %c0_21] : memref<1x1024xf32, #tpu.memory_space<vmem>>, vector<1x1024xf32>
    %27 = vector.broadcast %26 : vector<1x1024xf32> to vector<8x1024xf32>
    %28 = arith.addf %25, %27 : vector<8x1024xf32>
    %29 = tpu.iota {dimensions = array<i32: 0>} : vector<8x1xi32>
    %c8_i32 = arith.constant 8 : i32
    %30 = arith.muli %arg0, %c8_i32 : i32
    %31 = vector.broadcast %30 : i32 to vector<8x1xi32>
    %32 = arith.addi %29, %31 : vector<8x1xi32>
    %c2_i32 = arith.constant 2 : i32
    %33 = vector.broadcast %c2_i32 : i32 to vector<8x1xi32>
    %34 = arith.cmpi slt, %32, %33 : vector<8x1xi32>
    %35 = tpu.iota {dimensions = array<i32: 1>} : vector<8x64xi32>
    %c32_i32 = arith.constant 32 : i32
    %36 = vector.broadcast %c32_i32 : i32 to vector<8x64xi32>
    %37 = arith.cmpi slt, %35, %36 : vector<8x64xi32>
    %cst_22 = arith.constant 5.000000e-01 : f32
    %38 = vector.broadcast %cst_22 : f32 to vector<8x64xf32>
    %39 = arith.mulf %38, %14 : vector<8x64xf32>
    %40 = arith.mulf %39, %14 : vector<8x64xf32>
    %cst_23 = arith.constant 2.000000e+00 : f32
    %41 = vector.broadcast %cst_23 : f32 to vector<8x64xf32>
    %42 = arith.mulf %41, %14 : vector<8x64xf32>
    %43 = math.exp %42 : vector<8x64xf32>
    %cst_24 = arith.constant 1.000000e+00 : f32
    %44 = vector.broadcast %cst_24 : f32 to vector<8x64xf32>
    %45 = arith.subf %43, %44 : vector<8x64xf32>
    %cst_25 = arith.constant 2.000000e+00 : f32
    %46 = vector.broadcast %cst_25 : f32 to vector<8x64xf32>
    %47 = arith.mulf %46, %14 : vector<8x64xf32>
    %48 = arith.subf %45, %47 : vector<8x64xf32>
    %cst_26 = arith.constant 5.000000e-01 : f32
    %49 = vector.broadcast %cst_26 : f32 to vector<8x64xf32>
    %50 = arith.mulf %49, %48 : vector<8x64xf32>
    %51 = arith.select %37, %40, %50 : vector<8x64xi1>, vector<8x64xf32>
    %cst_27 = arith.constant dense<0.000000e+00> : vector<8xf32>
    %52 = vector.multi_reduction <add>, %51, %cst_27 [1] : vector<8x64xf32> to vector<8xf32>
    %53 = vector.shape_cast %52 : vector<8xf32> to vector<8x1xf32>
    %cst_28 = arith.constant 0.000000e+00 : f32
    %54 = vector.broadcast %cst_28 : f32 to vector<8x1xf32>
    %55 = arith.select %34, %53, %54 : vector<8x1xi1>, vector<8x1xf32>
    %56 = vector.shape_cast %55 : vector<8x1xf32> to vector<1x8x1xf32>
    %cst_29 = arith.constant dense<0.000000e+00> : vector<1xf32>
    %57 = vector.multi_reduction <add>, %56, %cst_29 [1, 2] : vector<1x8x1xf32> to vector<1xf32>
    %58 = vector.shape_cast %57 : vector<1xf32> to vector<1x1x1xf32>
    %59 = vector.extract %58[0, 0, 0] : f32 from vector<1x1x1xf32>
    %cst_30 = arith.constant 0.000000e+00 : f32
    %60 = vector.broadcast %cst_30 : f32 to vector<8x1024xf32>
    %61 = arith.maximumf %28, %60 : vector<8x1024xf32>
    %62 = arith.mulf %28, %0 : vector<8x1024xf32>
    %63 = arith.subf %61, %62 : vector<8x1024xf32>
    %64 = math.absf %28 : vector<8x1024xf32>
    %cst_31 = arith.constant 0.000000e+00 : f32
    %65 = vector.broadcast %cst_31 : f32 to vector<8x1024xf32>
    %66 = arith.subf %65, %64 : vector<8x1024xf32>
    %67 = math.exp %66 : vector<8x1024xf32>
    %cst_32 = arith.constant 1.000000e+00 : f32
    %68 = vector.broadcast %cst_32 : f32 to vector<8x1024xf32>
    %69 = arith.addf %68, %67 : vector<8x1024xf32>
    %70 = math.log %69 : vector<8x1024xf32>
    %71 = arith.addf %63, %70 : vector<8x1024xf32>
    %cst_33 = arith.constant dense<0.000000e+00> : vector<8xf32>
    %72 = vector.multi_reduction <add>, %71, %cst_33 [1] : vector<8x1024xf32> to vector<8xf32>
    %73 = vector.shape_cast %72 : vector<8xf32> to vector<8x1xf32>
    %cst_34 = arith.constant 0.000000e+00 : f32
    %74 = vector.broadcast %cst_34 : f32 to vector<8x1xf32>
    %75 = arith.select %34, %73, %74 : vector<8x1xi1>, vector<8x1xf32>
    %76 = vector.shape_cast %75 : vector<8x1xf32> to vector<1x8x1xf32>
    %cst_35 = arith.constant dense<0.000000e+00> : vector<1xf32>
    %77 = vector.multi_reduction <add>, %76, %cst_35 [1, 2] : vector<1x8x1xf32> to vector<1xf32>
    %78 = vector.shape_cast %77 : vector<1xf32> to vector<1x1x1xf32>
    %79 = vector.extract %78[0, 0, 0] : f32 from vector<1x1x1xf32>
    %cst_36 = arith.constant 4.000000e+00 : f32
    %80 = arith.mulf %cst_36, %59 : f32
    %81 = arith.addf %80, %79 : f32
    %c0_37 = arith.constant 0 : index
    %c0_38 = arith.constant 0 : index
    %82 = memref.load %arg10[%c0_37, %c0_38] : memref<1x1xf32, #tpu.memory_space<smem>>
    memref.store %81, %arg10[%c0_37, %c0_38] : memref<1x1xf32, #tpu.memory_space<smem>>
    return
  }
  func.func @transform_0(%arg0: i32) -> (i32, i32) {
    %c0_i32 = arith.constant 0 : i32
    %c0_i32_0 = arith.constant 0 : i32
    return %arg0, %c0_i32 : i32, i32
  }
  func.func @transform_1(%arg0: i32) -> (i32, i32) {
    %c0_i32 = arith.constant 0 : i32
    %c0_i32_0 = arith.constant 0 : i32
    %c0_i32_1 = arith.constant 0 : i32
    return %c0_i32, %c0_i32_0 : i32, i32
  }
  func.func @transform_2(%arg0: i32) -> (i32, i32) {
    %c0_i32 = arith.constant 0 : i32
    %c0_i32_0 = arith.constant 0 : i32
    %c0_i32_1 = arith.constant 0 : i32
    return %c0_i32, %c0_i32_0 : i32, i32
  }
  func.func @transform_3(%arg0: i32) -> (i32, i32) {
    %c0_i32 = arith.constant 0 : i32
    %c0_i32_0 = arith.constant 0 : i32
    %c0_i32_1 = arith.constant 0 : i32
    return %c0_i32, %c0_i32_0 : i32, i32
  }
  func.func @transform_4(%arg0: i32) -> (i32, i32) {
    %c0_i32 = arith.constant 0 : i32
    %c0_i32_0 = arith.constant 0 : i32
    %c0_i32_1 = arith.constant 0 : i32
    return %c0_i32, %c0_i32_0 : i32, i32
  }
  func.func @transform_5(%arg0: i32) -> (i32, i32) {
    %c0_i32 = arith.constant 0 : i32
    %c0_i32_0 = arith.constant 0 : i32
    %c0_i32_1 = arith.constant 0 : i32
    return %c0_i32, %c0_i32_0 : i32, i32
  }
  func.func @transform_6(%arg0: i32) -> (i32, i32) {
    %c0_i32 = arith.constant 0 : i32
    %c0_i32_0 = arith.constant 0 : i32
    %c0_i32_1 = arith.constant 0 : i32
    return %c0_i32, %c0_i32_0 : i32, i32
  }
  func.func @transform_7(%arg0: i32) -> (i32, i32) {
    %c0_i32 = arith.constant 0 : i32
    %c0_i32_0 = arith.constant 0 : i32
    %c0_i32_1 = arith.constant 0 : i32
    return %c0_i32, %c0_i32_0 : i32, i32
  }
  func.func @transform_8(%arg0: i32) -> (i32, i32) {
    %c0_i32 = arith.constant 0 : i32
    %c0_i32_0 = arith.constant 0 : i32
    %c0_i32_1 = arith.constant 0 : i32
    return %c0_i32, %c0_i32_0 : i32, i32
  }
  func.func @transform_9(%arg0: i32) -> (i32, i32) {
    %c0_i32 = arith.constant 0 : i32
    %c0_i32_0 = arith.constant 0 : i32
    return %arg0, %c0_i32 : i32, i32
  }
}

</mosaic_0001>

<llo_original>
// kernel: tpu_custom_call.1
$region0: #{tpu_custom_call.1}
  #allocation0 [shape = 'u32[]', space=smem, size = 0x4, offset = 0x4, fixed_abs, tag = 'smem constant byte address 0x4 - core index']
  #allocation1 [shape = 'u32[144,128]{1,0:T(1,128)}', space=vmem, size = 0x12000, scoped, tag = 'internal scratch']
  %s0 = inlined_call_operand.vmem [shape: f32[8,1024], index: 0, kind: input, shape index: {}]
  %s1 = inlined_call_operand.hbm [shape: bf16[1024,128], index: 1, kind: input, shape index: {}]
  %s2 = inlined_call_operand.vmem [shape: f32[1,128], index: 2, kind: input, shape index: {}]
  %s3 = inlined_call_operand.vmem [shape: bf16[128,64], index: 3, kind: input, shape index: {}]
  %s4 = inlined_call_operand.hbm [shape: f32[1,64], index: 4, kind: input, shape index: {}]
  %s5 = inlined_call_operand.vmem [shape: bf16[64,128], index: 5, kind: input, shape index: {}]
  %s6 = inlined_call_operand.vmem [shape: f32[1,128], index: 6, kind: input, shape index: {}]
  %s7 = inlined_call_operand.hbm [shape: bf16[128,1024], index: 7, kind: input, shape index: {}]
  %s8 = inlined_call_operand.vmem [shape: f32[1,1024], index: 8, kind: input, shape index: {}]
  %s9 = inlined_call_operand.hbm [shape: f32[1,1], index: 9, kind: output, shape index: {}]
  %s10 = sld [smem:[#allocation0]]
  $region58: #{tpu_custom_call.1} parent=0
    _
  %s12 = ssub.s32 1, %s10
  %s13 = scalar_select 0, %s12, %s10
  $region1: #{tpu_custom_call.1} parent=0
    #allocation2 [shape = 'u8[262144]{0}', space=vmem, size = 0x40000, scoped, tag = 'input window, operand 1, single buffered']
    #allocation3 [shape = 's32[1]{0}', space=sflag, size = 0x4, scoped, tag = 'scoped memory for tpu_custom_call.1']
    #allocation4 [shape = 's32[1]{0}', space=sflag, size = 0x4, scoped, tag = 'scoped memory for tpu_custom_call.1']
    #allocation5 [shape = 'u8[512]{0}', space=vmem, size = 0x400, scoped, tag = 'input window, operand 4, single buffered']
    #allocation6 [shape = 's32[1]{0}', space=sflag, size = 0x4, scoped, tag = 'scoped memory for tpu_custom_call.1']
    #allocation7 [shape = 'u8[262144]{0}', space=vmem, size = 0x40000, scoped, tag = 'input window, operand 7, single buffered']
    #allocation8 [shape = 'u8[512]{0}', space=smem, size = 0x200, scoped, tag = 'output window, operand 0, single buffered']
    %14 = vsyncpa [#allocation3], 0
    %15 = vsyncpa [#allocation6], 0
    %16 = vsyncpa [#allocation4], 0
    // Predicated region
    $region2: #{tpu_custom_call.1} parent=1 // pred_check
      _
    $region3: #{tpu_custom_call.1} parent=1 // pred_check_branch
      %18 = sbr.rel (0) target = $region5
    $region4: #{tpu_custom_call.1} parent=1 // pred_region
      _
    $region5: #{tpu_custom_call.1} parent=1 // pred_fallthru
      _
    // Predicated region
    $region6: #{tpu_custom_call.1} parent=1 // pred_check
      _
    $region7: #{tpu_custom_call.1} parent=1 // pred_check_branch
      %20 = sbr.rel (0) target = $region9
    $region8: #{tpu_custom_call.1} parent=1 // pred_region
      %s22 = ssub.s32 8192, 8192
      %23 = vsyncadd [#allocation3], %s22
      %s24 = sshll.u32 [#allocation2], 4
      %s25 = int_to_ptr.vmem [resolvable:$true] %s24
      %30 = dma.hbm_to_vmem [thread:$0]  %s1, 8192, %s25, [#allocation3], 64, 64, 4
    $region9: #{tpu_custom_call.1} parent=1 // pred_fallthru
      _
    // Predicated region
    $region10: #{tpu_custom_call.1} parent=1 // pred_check
      _
    $region11: #{tpu_custom_call.1} parent=1 // pred_check_branch
      %32 = sbr.rel (0) target = $region13
    $region12: #{tpu_custom_call.1} parent=1 // pred_region
      _
    $region13: #{tpu_custom_call.1} parent=1 // pred_fallthru
      _
    // Predicated region
    $region14: #{tpu_custom_call.1} parent=1 // pred_check
      _
    $region15: #{tpu_custom_call.1} parent=1 // pred_check_branch
      %34 = sbr.rel (0) target = $region17
    $region16: #{tpu_custom_call.1} parent=1 // pred_region
      _
    $region17: #{tpu_custom_call.1} parent=1 // pred_fallthru
      _
    // Predicated region
    $region18: #{tpu_custom_call.1} parent=1 // pred_check
      _
    $region19: #{tpu_custom_call.1} parent=1 // pred_check_branch
      %36 = sbr.rel (0) target = $region21
    $region20: #{tpu_custom_call.1} parent=1 // pred_region
      %s38 = ssub.s32 16, 16
      %39 = vsyncadd [#allocation6], %s38
      %s41 = sshll.u32 [#allocation5], 4
      %s42 = int_to_ptr.vmem [resolvable:$true] %s41
      %44 = dma.hbm_to_vmem [thread:$0]  %s4, 16, %s42, [#allocation6]
    $region21: #{tpu_custom_call.1} parent=1 // pred_fallthru
      _
    // Predicated region
    $region22: #{tpu_custom_call.1} parent=1 // pred_check
      _
    $region23: #{tpu_custom_call.1} parent=1 // pred_check_branch
      %46 = sbr.rel (0) target = $region25
    $region24: #{tpu_custom_call.1} parent=1 // pred_region
      _
    $region25: #{tpu_custom_call.1} parent=1 // pred_fallthru
      _
    // Predicated region
    $region26: #{tpu_custom_call.1} parent=1 // pred_check
      _
    $region27: #{tpu_custom_call.1} parent=1 // pred_check_branch
      %48 = sbr.rel (0) target = $region29
    $region28: #{tpu_custom_call.1} parent=1 // pred_region
      _
    $region29: #{tpu_custom_call.1} parent=1 // pred_fallthru
      _
    // Predicated region
    $region30: #{tpu_custom_call.1} parent=1 // pred_check
      _
    $region31: #{tpu_custom_call.1} parent=1 // pred_check_branch
      %50 = sbr.rel (0) target = $region33
    $region32: #{tpu_custom_call.1} parent=1 // pred_region
      %s52 = ssub.s32 8192, 8192
      %53 = vsyncadd [#allocation6], %s52
      %s54 = sshll.u32 [#allocation7], 4
      %s55 = int_to_ptr.vmem [resolvable:$true] %s54
      %60 = dma.hbm_to_vmem [thread:$0]  %s7, 8192, %s55, [#allocation6], 512, 512, 32
    $region33: #{tpu_custom_call.1} parent=1 // pred_fallthru
      _
    // Predicated region
    $region34: #{tpu_custom_call.1} parent=1 // pred_check
      _
    $region35: #{tpu_custom_call.1} parent=1 // pred_check_branch
      %62 = sbr.rel (0) target = $region37
    $region36: #{tpu_custom_call.1} parent=1 // pred_region
      _
    $region37: #{tpu_custom_call.1} parent=1 // pred_fallthru
      _
    // Predicated region
    $region38: #{tpu_custom_call.1} parent=1 // pred_check
      _
    $region39: #{tpu_custom_call.1} parent=1 // pred_check_branch
      %64 = sbr.rel (0) target = $region41
    $region40: #{tpu_custom_call.1} parent=1 // pred_region
      %65 = dma.done [#allocation3], 8192
    $region41: #{tpu_custom_call.1} parent=1 // pred_fallthru
      _
    // Predicated region
    $region42: #{tpu_custom_call.1} parent=1 // pred_check
      _
    $region43: #{tpu_custom_call.1} parent=1 // pred_check_branch
      %67 = sbr.rel (0) target = $region45
    $region44: #{tpu_custom_call.1} parent=1 // pred_region
      %68 = dma.done [#allocation6], 16
    $region45: #{tpu_custom_call.1} parent=1 // pred_fallthru
      _
    // Predicated region
    $region46: #{tpu_custom_call.1} parent=1 // pred_check
      _
    $region47: #{tpu_custom_call.1} parent=1 // pred_check_branch
      %70 = sbr.rel (0) target = $region49
    $region48: #{tpu_custom_call.1} parent=1 // pred_region
      %71 = dma.done [#allocation6], 8192
    $region49: #{tpu_custom_call.1} parent=1 // pred_fallthru
      _
    %v73 = vld [vmem:[%s0] sm:$0xff]
    %v74 = vld [vmem:[%s0 + $0x8] sm:$0xff]
    %v75 = vld [vmem:[%s0 + $0x10] sm:$0xff]
    %v76 = vld [vmem:[%s0 + $0x18] sm:$0xff]
    %v77 = vld [vmem:[%s0 + $0x20] sm:$0xff]
    %v78 = vld [vmem:[%s0 + $0x28] sm:$0xff]
    %v79 = vld [vmem:[%s0 + $0x30] sm:$0xff]
    %v80 = vld [vmem:[%s0 + $0x38] sm:$0xff]
    %v81 = vpack.c.bf16 %v73, %v73
    %v82 = vpack.c.bf16 %v74, %v74
    %v83 = vpack.c.bf16 %v75, %v75
    %v84 = vpack.c.bf16 %v76, %v76
    %v85 = vpack.c.bf16 %v77, %v77
    %v86 = vpack.c.bf16 %v78, %v78
    %v87 = vpack.c.bf16 %v79, %v79
    %v88 = vpack.c.bf16 %v80, %v80
    %v89 = vld [vmem:[#allocation2] sm:$0xf]
    %v90 = vld [vmem:[#allocation2 + $0x4] sm:$0xf]
    %v91 = vld [vmem:[#allocation2 + $0x8] sm:$0xf]
    %v92 = vld [vmem:[#allocation2 + $0xc] sm:$0xf]
    %v93 = vld [vmem:[#allocation2 + $0x10] sm:$0xf]
    %v94 = vld [vmem:[#allocation2 + $0x14] sm:$0xf]
    %v95 = vld [vmem:[#allocation2 + $0x18] sm:$0xf]
    %v96 = vld [vmem:[#allocation2 + $0x1c] sm:$0xf]
    %v97 = vld [vmem:[#allocation2 + $0x20] sm:$0xf]
    %v98 = vld [vmem:[#allocation2 + $0x24] sm:$0xf]
    %v99 = vld [vmem:[#allocation2 + $0x28] sm:$0xf]
    %v100 = vld [vmem:[#allocation2 + $0x2c] sm:$0xf]
    %v101 = vld [vmem:[#allocation2 + $0x30] sm:$0xf]
    %v102 = vld [vmem:[#allocation2 + $0x34] sm:$0xf]
    %v103 = vld [vmem:[#allocation2 + $0x38] sm:$0xf]
    %v104 = vld [vmem:[#allocation2 + $0x3c] sm:$0xf]
    %v105 = vld [vmem:[#allocation2 + $0x40] sm:$0xf]
    %v106 = vld [vmem:[#allocation2 + $0x44] sm:$0xf]
    %v107 = vld [vmem:[#allocation2 + $0x48] sm:$0xf]
    %v108 = vld [vmem:[#allocation2 + $0x4c] sm:$0xf]
    %v109 = vld [vmem:[#allocation2 + $0x50] sm:$0xf]
    %v110 = vld [vmem:[#allocation2 + $0x54] sm:$0xf]
    %v111 = vld [vmem:[#allocation2 + $0x58] sm:$0xf]
    %v112 = vld [vmem:[#allocation2 + $0x5c] sm:$0xf]
    %v113 = vld [vmem:[#allocation2 + $0x60] sm:$0xf]
    %v114 = vld [vmem:[#allocation2 + $0x64] sm:$0xf]
    %v115 = vld [vmem:[#allocation2 + $0x68] sm:$0xf]
    %v116 = vld [vmem:[#allocation2 + $0x6c] sm:$0xf]
    %v117 = vld [vmem:[#allocation2 + $0x70] sm:$0xf]
    %v118 = vld [vmem:[#allocation2 + $0x74] sm:$0xf]
    %v119 = vld [vmem:[#allocation2 + $0x78] sm:$0xf]
    %v120 = vld [vmem:[#allocation2 + $0x7c] sm:$0xf]
    %v121 = vld [vmem:[#allocation2 + $0x80] sm:$0xf]
    %v122 = vld [vmem:[#allocation2 + $0x84] sm:$0xf]
    %v123 = vld [vmem:[#allocation2 + $0x88] sm:$0xf]
    %v124 = vld [vmem:[#allocation2 + $0x8c] sm:$0xf]
    %v125 = vld [vmem:[#allocation2 + $0x90] sm:$0xf]
    %v126 = vld [vmem:[#allocation2 + $0x94] sm:$0xf]
    %v127 = vld [vmem:[#allocation2 + $0x98] sm:$0xf]
    %v128 = vld [vmem:[#allocation2 + $0x9c] sm:$0xf]
    %v129 = vld [vmem:[#allocation2 + $0xa0] sm:$0xf]
    %v130 = vld [vmem:[#allocation2 + $0xa4] sm:$0xf]
    %v131 = vld [vmem:[#allocation2 + $0xa8] sm:$0xf]
    %v132 = vld [vmem:[#allocation2 + $0xac] sm:$0xf]
    %v133 = vld [vmem:[#allocation2 + $0xb0] sm:$0xf]
    %v134 = vld [vmem:[#allocation2 + $0xb4] sm:$0xf]
    %v135 = vld [vmem:[#allocation2 + $0xb8] sm:$0xf]
    %v136 = vld [vmem:[#allocation2 + $0xbc] sm:$0xf]
    %v137 = vld [vmem:[#allocation2 + $0xc0] sm:$0xf]
    %v138 = vld [vmem:[#allocation2 + $0xc4] sm:$0xf]
    %v139 = vld [vmem:[#allocation2 + $0xc8] sm:$0xf]
    %v140 = vld [vmem:[#allocation2 + $0xcc] sm:$0xf]
    %v141 = vld [vmem:[#allocation2 + $0xd0] sm:$0xf]
    %v142 = vld [vmem:[#allocation2 + $0xd4] sm:$0xf]
    %v143 = vld [vmem:[#allocation2 + $0xd8] sm:$0xf]
    %v144 = vld [vmem:[#allocation2 + $0xdc] sm:$0xf]
    %v145 = vld [vmem:[#allocation2 + $0xe0] sm:$0xf]
    %v146 = vld [vmem:[#allocation2 + $0xe4] sm:$0xf]
    %v147 = vld [vmem:[#allocation2 + $0xe8] sm:$0xf]
    %v148 = vld [vmem:[#allocation2 + $0xec] sm:$0xf]
    %v149 = vld [vmem:[#allocation2 + $0xf0] sm:$0xf]
    %v150 = vld [vmem:[#allocation2 + $0xf4] sm:$0xf]
    %v151 = vld [vmem:[#allocation2 + $0xf8] sm:$0xf]
    %v152 = vld [vmem:[#allocation2 + $0xfc] sm:$0xf]
    %v153 = vld [vmem:[#allocation2 + $0x100] sm:$0xf]
    %v154 = vld [vmem:[#allocation2 + $0x104] sm:$0xf]
    %v155 = vld [vmem:[#allocation2 + $0x108] sm:$0xf]
    %v156 = vld [vmem:[#allocation2 + $0x10c] sm:$0xf]
    %v157 = vld [vmem:[#allocation2 + $0x110] sm:$0xf]
    %v158 = vld [vmem:[#allocation2 + $0x114] sm:$0xf]
    %v159 = vld [vmem:[#allocation2 + $0x118] sm:$0xf]
    %v160 = vld [vmem:[#allocation2 + $0x11c] sm:$0xf]
    %v161 = vld [vmem:[#allocation2 + $0x120] sm:$0xf]
    %v162 = vld [vmem:[#allocation2 + $0x124] sm:$0xf]
    %v163 = vld [vmem:[#allocation2 + $0x128] sm:$0xf]
    %v164 = vld [vmem:[#allocation2 + $0x12c] sm:$0xf]
    %v165 = vld [vmem:[#allocation2 + $0x130] sm:$0xf]
    %v166 = vld [vmem:[#allocation2 + $0x134] sm:$0xf]
    %v167 = vld [vmem:[#allocation2 + $0x138] sm:$0xf]
    %v168 = vld [vmem:[#allocation2 + $0x13c] sm:$0xf]
    %v169 = vld [vmem:[#allocation2 + $0x140] sm:$0xf]
    %v170 = vld [vmem:[#allocation2 + $0x144] sm:$0xf]
    %v171 = vld [vmem:[#allocation2 + $0x148] sm:$0xf]
    %v172 = vld [vmem:[#allocation2 + $0x14c] sm:$0xf]
    %v173 = vld [vmem:[#allocation2 + $0x150] sm:$0xf]
    %v174 = vld [vmem:[#allocation2 + $0x154] sm:$0xf]
    %v175 = vld [vmem:[#allocation2 + $0x158] sm:$0xf]
    %v176 = vld [vmem:[#allocation2 + $0x15c] sm:$0xf]
    %v177 = vld [vmem:[#allocation2 + $0x160] sm:$0xf]
    %v178 = vld [vmem:[#allocation2 + $0x164] sm:$0xf]
    %v179 = vld [vmem:[#allocation2 + $0x168] sm:$0xf]
    %v180 = vld [vmem:[#allocation2 + $0x16c] sm:$0xf]
    %v181 = vld [vmem:[#allocation2 + $0x170] sm:$0xf]
    %v182 = vld [vmem:[#allocation2 + $0x174] sm:$0xf]
    %v183 = vld [vmem:[#allocation2 + $0x178] sm:$0xf]
    %v184 = vld [vmem:[#allocation2 + $0x17c] sm:$0xf]
    %v185 = vld [vmem:[#allocation2 + $0x180] sm:$0xf]
    %v186 = vld [vmem:[#allocation2 + $0x184] sm:$0xf]
    %v187 = vld [vmem:[#allocation2 + $0x188] sm:$0xf]
    %v188 = vld [vmem:[#allocation2 + $0x18c] sm:$0xf]
    %v189 = vld [vmem:[#allocation2 + $0x190] sm:$0xf]
    %v190 = vld [vmem:[#allocation2 + $0x194] sm:$0xf]
    %v191 = vld [vmem:[#allocation2 + $0x198] sm:$0xf]
    %v192 = vld [vmem:[#allocation2 + $0x19c] sm:$0xf]
    %v193 = vld [vmem:[#allocation2 + $0x1a0] sm:$0xf]
    %v194 = vld [vmem:[#allocation2 + $0x1a4] sm:$0xf]
    %v195 = vld [vmem:[#allocation2 + $0x1a8] sm:$0xf]
    %v196 = vld [vmem:[#allocation2 + $0x1ac] sm:$0xf]
    %v197 = vld [vmem:[#allocation2 + $0x1b0] sm:$0xf]
    %v198 = vld [vmem:[#allocation2 + $0x1b4] sm:$0xf]
    %v199 = vld [vmem:[#allocation2 + $0x1b8] sm:$0xf]
    %v200 = vld [vmem:[#allocation2 + $0x1bc] sm:$0xf]
    %v201 = vld [vmem:[#allocation2 + $0x1c0] sm:$0xf]
    %v202 = vld [vmem:[#allocation2 + $0x1c4] sm:$0xf]
    %v203 = vld [vmem:[#allocation2 + $0x1c8] sm:$0xf]
    %v204 = vld [vmem:[#allocation2 + $0x1cc] sm:$0xf]
    %v205 = vld [vmem:[#allocation2 + $0x1d0] sm:$0xf]
    %v206 = vld [vmem:[#allocation2 + $0x1d4] sm:$0xf]
    %v207 = vld [vmem:[#allocation2 + $0x1d8] sm:$0xf]
    %v208 = vld [vmem:[#allocation2 + $0x1dc] sm:$0xf]
    %v209 = vld [vmem:[#allocation2 + $0x1e0] sm:$0xf]
    %v210 = vld [vmem:[#allocation2 + $0x1e4] sm:$0xf]
    %v211 = vld [vmem:[#allocation2 + $0x1e8] sm:$0xf]
    %v212 = vld [vmem:[#allocation2 + $0x1ec] sm:$0xf]
    %v213 = vld [vmem:[#allocation2 + $0x1f0] sm:$0xf]
    %v214 = vld [vmem:[#allocation2 + $0x1f4] sm:$0xf]
    %v215 = vld [vmem:[#allocation2 + $0x1f8] sm:$0xf]
    %v216 = vld [vmem:[#allocation2 + $0x1fc] sm:$0xf]
    %v217 = vld [vmem:[%s2] sm:$0x1]
    %v219 = vlaneseq
    %v220 = vshrl.u32 %v219, 7
    %v221 = vsub.s32 0, %v220
    %v222 = vrot.slane %v217, %v221
    %v352 = vunpack.c.l.b16 %v89
    %v353 = vunpack.c.l.b16 %v90
    %v354 = vunpack.c.l.b16 %v91
    %v355 = vunpack.c.l.b16 %v92
    %v356 = vunpack.c.l.b16 %v93
    %v357 = vunpack.c.l.b16 %v94
    %v358 = vunpack.c.l.b16 %v95
    %v359 = vunpack.c.l.b16 %v96
    %v360 = vunpack.c.l.b16 %v97
    %v361 = vunpack.c.l.b16 %v98
    %v362 = vunpack.c.l.b16 %v99
    %v363 = vunpack.c.l.b16 %v100
    %v364 = vunpack.c.l.b16 %v101
    %v365 = vunpack.c.l.b16 %v102
    %v366 = vunpack.c.l.b16 %v103
    %v367 = vunpack.c.l.b16 %v104
    %v368 = vunpack.c.l.b16 %v105
    %v369 = vunpack.c.l.b16 %v106
    %v370 = vunpack.c.l.b16 %v107
    %v371 = vunpack.c.l.b16 %v108
    %v372 = vunpack.c.l.b16 %v109
    %v373 = vunpack.c.l.b16 %v110
    %v374 = vunpack.c.l.b16 %v111
    %v375 = vunpack.c.l.b16 %v112
    %v376 = vunpack.c.l.b16 %v113
    %v377 = vunpack.c.l.b16 %v114
    %v378 = vunpack.c.l.b16 %v115
    %v379 = vunpack.c.l.b16 %v116
    %v380 = vunpack.c.l.b16 %v117
    %v381 = vunpack.c.l.b16 %v118
    %v382 = vunpack.c.l.b16 %v119
    %v383 = vunpack.c.l.b16 %v120
    %v384 = vunpack.c.l.b16 %v121
    %v385 = vunpack.c.l.b16 %v122
    %v386 = vunpack.c.l.b16 %v123
    %v387 = vunpack.c.l.b16 %v124
    %v388 = vunpack.c.l.b16 %v125
    %v389 = vunpack.c.l.b16 %v126
    %v390 = vunpack.c.l.b16 %v127
    %v391 = vunpack.c.l.b16 %v128
    %v392 = vunpack.c.l.b16 %v129
    %v393 = vunpack.c.l.b16 %v130
    %v394 = vunpack.c.l.b16 %v131
    %v395 = vunpack.c.l.b16 %v132
    %v396 = vunpack.c.l.b16 %v133
    %v397 = vunpack.c.l.b16 %v134
    %v398 = vunpack.c.l.b16 %v135
    %v399 = vunpack.c.l.b16 %v136
    %v400 = vunpack.c.l.b16 %v137
    %v401 = vunpack.c.l.b16 %v138
    %v402 = vunpack.c.l.b16 %v139
    %v403 = vunpack.c.l.b16 %v140
    %v404 = vunpack.c.l.b16 %v141
    %v405 = vunpack.c.l.b16 %v142
    %v406 = vunpack.c.l.b16 %v143
    %v407 = vunpack.c.l.b16 %v144
    %v408 = vunpack.c.l.b16 %v145
    %v409 = vunpack.c.l.b16 %v146
    %v410 = vunpack.c.l.b16 %v147
    %v411 = vunpack.c.l.b16 %v148
    %v412 = vunpack.c.l.b16 %v149
    %v413 = vunpack.c.l.b16 %v150
    %v414 = vunpack.c.l.b16 %v151
    %v415 = vunpack.c.l.b16 %v152
    %v416 = vunpack.c.l.b16 %v153
    %v417 = vunpack.c.l.b16 %v154
    %v418 = vunpack.c.l.b16 %v155
    %v419 = vunpack.c.l.b16 %v156
    %v420 = vunpack.c.l.b16 %v157
    %v421 = vunpack.c.l.b16 %v158
    %v422 = vunpack.c.l.b16 %v159
    %v423 = vunpack.c.l.b16 %v160
    %v424 = vunpack.c.l.b16 %v161
    %v425 = vunpack.c.l.b16 %v162
    %v426 = vunpack.c.l.b16 %v163
    %v427 = vunpack.c.l.b16 %v164
    %v428 = vunpack.c.l.b16 %v165
    %v429 = vunpack.c.l.b16 %v166
    %v430 = vunpack.c.l.b16 %v167
    %v431 = vunpack.c.l.b16 %v168
    %v432 = vunpack.c.l.b16 %v169
    %v433 = vunpack.c.l.b16 %v170
    %v434 = vunpack.c.l.b16 %v171
    %v435 = vunpack.c.l.b16 %v172
    %v436 = vunpack.c.l.b16 %v173
    %v437 = vunpack.c.l.b16 %v174
    %v438 = vunpack.c.l.b16 %v175
    %v439 = vunpack.c.l.b16 %v176
    %v440 = vunpack.c.l.b16 %v177
    %v441 = vunpack.c.l.b16 %v178
    %v442 = vunpack.c.l.b16 %v179
    %v443 = vunpack.c.l.b16 %v180
    %v444 = vunpack.c.l.b16 %v181
    %v445 = vunpack.c.l.b16 %v182
    %v446 = vunpack.c.l.b16 %v183
    %v447 = vunpack.c.l.b16 %v184
    %v448 = vunpack.c.l.b16 %v185
    %v449 = vunpack.c.l.b16 %v186
    %v450 = vunpack.c.l.b16 %v187
    %v451 = vunpack.c.l.b16 %v188
    %v452 = vunpack.c.l.b16 %v189
    %v453 = vunpack.c.l.b16 %v190
    %v454 = vunpack.c.l.b16 %v191
    %v455 = vunpack.c.l.b16 %v192
    %v456 = vunpack.c.l.b16 %v193
    %v457 = vunpack.c.l.b16 %v194
    %v458 = vunpack.c.l.b16 %v195
    %v459 = vunpack.c.l.b16 %v196
    %v460 = vunpack.c.l.b16 %v197
    %v461 = vunpack.c.l.b16 %v198
    %v462 = vunpack.c.l.b16 %v199
    %v463 = vunpack.c.l.b16 %v200
    %v464 = vunpack.c.l.b16 %v201
    %v465 = vunpack.c.l.b16 %v202
    %v466 = vunpack.c.l.b16 %v203
    %v467 = vunpack.c.l.b16 %v204
    %v468 = vunpack.c.l.b16 %v205
    %v469 = vunpack.c.l.b16 %v206
    %v470 = vunpack.c.l.b16 %v207
    %v471 = vunpack.c.l.b16 %v208
    %v472 = vunpack.c.l.b16 %v209
    %v473 = vunpack.c.l.b16 %v210
    %v474 = vunpack.c.l.b16 %v211
    %v475 = vunpack.c.l.b16 %v212
    %v476 = vunpack.c.l.b16 %v213
    %v477 = vunpack.c.l.b16 %v214
    %v478 = vunpack.c.l.b16 %v215
    %v479 = vunpack.c.l.b16 %v216
    %v480 = vpack.c.b16 %v353, %v352
    %v481 = vpack.c.b16 %v355, %v354
    %v482 = vpack.c.b16 %v357, %v356
    %v483 = vpack.c.b16 %v359, %v358
    %v484 = vpack.c.b16 %v361, %v360
    %v485 = vpack.c.b16 %v363, %v362
    %v486 = vpack.c.b16 %v365, %v364
    %v487 = vpack.c.b16 %v367, %v366
    %v488 = vpack.c.b16 %v369, %v368
    %v489 = vpack.c.b16 %v371, %v370
    %v490 = vpack.c.b16 %v373, %v372
    %v491 = vpack.c.b16 %v375, %v374
    %v492 = vpack.c.b16 %v377, %v376
    %v493 = vpack.c.b16 %v379, %v378
    %v494 = vpack.c.b16 %v381, %v380
    %v495 = vpack.c.b16 %v383, %v382
    %v496 = vpack.c.b16 %v385, %v384
    %v497 = vpack.c.b16 %v387, %v386
    %v498 = vpack.c.b16 %v389, %v388
    %v499 = vpack.c.b16 %v391, %v390
    %v500 = vpack.c.b16 %v393, %v392
    %v501 = vpack.c.b16 %v395, %v394
    %v502 = vpack.c.b16 %v397, %v396
    %v503 = vpack.c.b16 %v399, %v398
    %v504 = vpack.c.b16 %v401, %v400
    %v505 = vpack.c.b16 %v403, %v402
    %v506 = vpack.c.b16 %v405, %v404
    %v507 = vpack.c.b16 %v407, %v406
    %v508 = vpack.c.b16 %v409, %v408
    %v509 = vpack.c.b16 %v411, %v410
    %v510 = vpack.c.b16 %v413, %v412
    %v511 = vpack.c.b16 %v415, %v414
    %v512 = vpack.c.b16 %v417, %v416
    %v513 = vpack.c.b16 %v419, %v418
    %v514 = vpack.c.b16 %v421, %v420
    %v515 = vpack.c.b16 %v423, %v422
    %v516 = vpack.c.b16 %v425, %v424
    %v517 = vpack.c.b16 %v427, %v426
    %v518 = vpack.c.b16 %v429, %v428
    %v519 = vpack.c.b16 %v431, %v430
    %v520 = vpack.c.b16 %v433, %v432
    %v521 = vpack.c.b16 %v435, %v434
    %v522 = vpack.c.b16 %v437, %v436
    %v523 = vpack.c.b16 %v439, %v438
    %v524 = vpack.c.b16 %v441, %v440
    %v525 = vpack.c.b16 %v443, %v442
    %v526 = vpack.c.b16 %v445, %v444
    %v527 = vpack.c.b16 %v447, %v446
    %v528 = vpack.c.b16 %v449, %v448
    %v529 = vpack.c.b16 %v451, %v450
    %v530 = vpack.c.b16 %v453, %v452
    %v531 = vpack.c.b16 %v455, %v454
    %v532 = vpack.c.b16 %v457, %v456
    %v533 = vpack.c.b16 %v459, %v458
    %v534 = vpack.c.b16 %v461, %v460
    %v535 = vpack.c.b16 %v463, %v462
    %v536 = vpack.c.b16 %v465, %v464
    %v537 = vpack.c.b16 %v467, %v466
    %v538 = vpack.c.b16 %v469, %v468
    %v539 = vpack.c.b16 %v471, %v470
    %v540 = vpack.c.b16 %v473, %v472
    %v541 = vpack.c.b16 %v475, %v474
    %v542 = vpack.c.b16 %v477, %v476
    %v543 = vpack.c.b16 %v479, %v478
    %608 = vmatprep.subr.bf16.mxu0 0
    %609 = vmatpush1.bf16.msra.mxu0 %v487
    %610 = vmatprep.subr.bf16.mxu0 0
    %611 = vmatpush1.bf16.msra.mxu0 %v486
    %612 = vmatprep.subr.bf16.mxu0 0
    %613 = vmatpush1.bf16.msra.mxu0 %v485
    %614 = vmatprep.subr.bf16.mxu0 0
    %615 = vmatpush1.bf16.msra.mxu0 %v484
    %616 = vmatprep.subr.bf16.mxu0 0
    %617 = vmatpush1.bf16.msra.mxu0 %v483
    %618 = vmatprep.subr.bf16.mxu0 0
    %619 = vmatpush1.bf16.msra.mxu0 %v482
    %620 = vmatprep.subr.bf16.mxu0 0
    %621 = vmatpush1.bf16.msra.mxu0 %v481
    %622 = vmatprep.subr.bf16.mxu0 0
    %623 = vmatpush1.bf16.msra.mxu0 %v480
    %624 = vmatprep.subr.bf16.mxu0 0
    %625 = vmatpush2.bf16.msra.mxu0 %v495
    %626 = vmatprep.subr.bf16.mxu0 0
    %627 = vmatpush2.bf16.msra.mxu0 %v494
    %628 = vmatprep.subr.bf16.mxu0 0
    %629 = vmatpush2.bf16.msra.mxu0 %v493
    %630 = vmatprep.subr.bf16.mxu0 0
    %631 = vmatpush2.bf16.msra.mxu0 %v492
    %632 = vmatprep.subr.bf16.mxu0 0
    %633 = vmatpush2.bf16.msra.mxu0 %v491
    %634 = vmatprep.subr.bf16.mxu0 0
    %635 = vmatpush2.bf16.msra.mxu0 %v490
    %636 = vmatprep.subr.bf16.mxu0 0
    %637 = vmatpush2.bf16.msra.mxu0 %v489
    %638 = vmatprep.subr.bf16.mxu0 0
    %639 = vmatpush2.bf16.msra.mxu0 %v488
    %640 = vmatprep.mubr.bf16.mxu0 %v82
    %641 = vmatmul.mubr.bf16.gmra.mxu0 %v81
    %v642 = vpop.f32.mrf.mxu0
    %v643 = vadd.f32 %v222, %v642
    %v644 = vpop.f32.mrf.mxu0
    %v645 = vpop.f32.mrf.mxu0
    %v646 = vpop.f32.mrf.mxu0
    %647 = vdwg.mxu0
    %648 = vmatprep.subr.bf16.mxu0 0
    %649 = vmatpush1.bf16.msra.mxu0 %v503
    %650 = vmatprep.subr.bf16.mxu0 0
    %651 = vmatpush1.bf16.msra.mxu0 %v502
    %652 = vmatprep.subr.bf16.mxu0 0
    %653 = vmatpush1.bf16.msra.mxu0 %v501
    %654 = vmatprep.subr.bf16.mxu0 0
    %655 = vmatpush1.bf16.msra.mxu0 %v500
    %656 = vmatprep.subr.bf16.mxu0 0
    %657 = vmatpush1.bf16.msra.mxu0 %v499
    %658 = vmatprep.subr.bf16.mxu0 0
    %659 = vmatpush1.bf16.msra.mxu0 %v498
    %660 = vmatprep.subr.bf16.mxu0 0
    %661 = vmatpush1.bf16.msra.mxu0 %v497
    %662 = vmatprep.subr.bf16.mxu0 0
    %663 = vmatpush1.bf16.msra.mxu0 %v496
    %664 = vmatprep.subr.bf16.mxu0 0
    %665 = vmatpush2.bf16.msra.mxu0 %v511
    %666 = vmatprep.subr.bf16.mxu0 0
    %667 = vmatpush2.bf16.msra.mxu0 %v510
    %668 = vmatprep.subr.bf16.mxu0 0
    %669 = vmatpush2.bf16.msra.mxu0 %v509
    %670 = vmatprep.subr.bf16.mxu0 0
    %671 = vmatpush2.bf16.msra.mxu0 %v508
    %672 = vmatprep.subr.bf16.mxu0 0
    %673 = vmatpush2.bf16.msra.mxu0 %v507
    %674 = vmatprep.subr.bf16.mxu0 0
    %675 = vmatpush2.bf16.msra.mxu0 %v506
    %676 = vmatprep.subr.bf16.mxu0 0
    %677 = vmatpush2.bf16.msra.mxu0 %v505
    %678 = vmatprep.subr.bf16.mxu0 0
    %679 = vmatpush2.bf16.msra.mxu0 %v504
    %680 = vmatprep.mubr.bf16.mxu0 %v84
    %681 = vmatmul.mubr.bf16.gmra.mxu0 %v83
    %v682 = vpop.f32.mrf.mxu0
    %v683 = vadd.f32 %v643, %v682
    %v684 = vpop.f32.mrf.mxu0
    %v685 = vpop.f32.mrf.mxu0
    %v686 = vpop.f32.mrf.mxu0
    %687 = vdwg.mxu0
    %688 = vmatprep.subr.bf16.mxu0 0
    %689 = vmatpush1.bf16.msra.mxu0 %v519
    %690 = vmatprep.subr.bf16.mxu0 0
    %691 = vmatpush1.bf16.msra.mxu0 %v518
    %692 = vmatprep.subr.bf16.mxu0 0
    %693 = vmatpush1.bf16.msra.mxu0 %v517
    %694 = vmatprep.subr.bf16.mxu0 0
    %695 = vmatpush1.bf16.msra.mxu0 %v516
    %696 = vmatprep.subr.bf16.mxu0 0
    %697 = vmatpush1.bf16.msra.mxu0 %v515
    %698 = vmatprep.subr.bf16.mxu0 0
    %699 = vmatpush1.bf16.msra.mxu0 %v514
    %700 = vmatprep.subr.bf16.mxu0 0
    %701 = vmatpush1.bf16.msra.mxu0 %v513
    %702 = vmatprep.subr.bf16.mxu0 0
    %703 = vmatpush1.bf16.msra.mxu0 %v512
    %704 = vmatprep.subr.bf16.mxu0 0
    %705 = vmatpush2.bf16.msra.mxu0 %v527
    %706 = vmatprep.subr.bf16.mxu0 0
    %707 = vmatpush2.bf16.msra.mxu0 %v526
    %708 = vmatprep.subr.bf16.mxu0 0
    %709 = vmatpush2.bf16.msra.mxu0 %v525
    %710 = vmatprep.subr.bf16.mxu0 0
    %711 = vmatpush2.bf16.msra.mxu0 %v524
    %712 = vmatprep.subr.bf16.mxu0 0
    %713 = vmatpush2.bf16.msra.mxu0 %v523
    %714 = vmatprep.subr.bf16.mxu0 0
    %715 = vmatpush2.bf16.msra.mxu0 %v522
    %716 = vmatprep.subr.bf16.mxu0 0
    %717 = vmatpush2.bf16.msra.mxu0 %v521
    %718 = vmatprep.subr.bf16.mxu0 0
    %719 = vmatpush2.bf16.msra.mxu0 %v520
    %720 = vmatprep.mubr.bf16.mxu0 %v86
    %721 = vmatmul.mubr.bf16.gmra.mxu0 %v85
    %v722 = vpop.f32.mrf.mxu0
    %v723 = vadd.f32 %v683, %v722
    %v724 = vpop.f32.mrf.mxu0
    %v725 = vpop.f32.mrf.mxu0
    %v726 = vpop.f32.mrf.mxu0
    %727 = vdwg.mxu0
    %728 = vmatprep.subr.bf16.mxu0 0
    %729 = vmatpush1.bf16.msra.mxu0 %v535
    %730 = vmatprep.subr.bf16.mxu0 0
    %731 = vmatpush1.bf16.msra.mxu0 %v534
    %732 = vmatprep.subr.bf16.mxu0 0
    %733 = vmatpush1.bf16.msra.mxu0 %v533
    %734 = vmatprep.subr.bf16.mxu0 0
    %735 = vmatpush1.bf16.msra.mxu0 %v532
    %736 = vmatprep.subr.bf16.mxu0 0
    %737 = vmatpush1.bf16.msra.mxu0 %v531
    %738 = vmatprep.subr.bf16.mxu0 0
    %739 = vmatpush1.bf16.msra.mxu0 %v530
    %740 = vmatprep.subr.bf16.mxu0 0
    %741 = vmatpush1.bf16.msra.mxu0 %v529
    %742 = vmatprep.subr.bf16.mxu0 0
    %743 = vmatpush1.bf16.msra.mxu0 %v528
    %744 = vmatprep.subr.bf16.mxu0 0
    %745 = vmatpush2.bf16.msra.mxu0 %v543
    %746 = vmatprep.subr.bf16.mxu0 0
    %747 = vmatpush2.bf16.msra.mxu0 %v542
    %748 = vmatprep.subr.bf16.mxu0 0
    %749 = vmatpush2.bf16.msra.mxu0 %v541
    %750 = vmatprep.subr.bf16.mxu0 0
    %751 = vmatpush2.bf16.msra.mxu0 %v540
    %752 = vmatprep.subr.bf16.mxu0 0
    %753 = vmatpush2.bf16.msra.mxu0 %v539
    %754 = vmatprep.subr.bf16.mxu0 0
    %755 = vmatpush2.bf16.msra.mxu0 %v538
    %756 = vmatprep.subr.bf16.mxu0 0
    %757 = vmatpush2.bf16.msra.mxu0 %v537
    %758 = vmatprep.subr.bf16.mxu0 0
    %759 = vmatpush2.bf16.msra.mxu0 %v536
    %760 = vmatprep.mubr.bf16.mxu0 %v88
    %761 = vmatmul.mubr.bf16.gmra.mxu0 %v87
    %v762 = vpop.f32.mrf.mxu0
    %v763 = vadd.f32 %v723, %v762
    %v764 = vpop.f32.mrf.mxu0
    %v765 = vpop.f32.mrf.mxu0
    %v766 = vpop.f32.mrf.mxu0
    %767 = vdwg.mxu0
    %v768 = vmax.f32 %v763, 0.0
    %v769 = vpack.c.bf16 %v768, %v768
    %v770 = vld [vmem:[%s3] sm:$0xf]
    %v771 = vld [vmem:[%s3 + $0x4] sm:$0xf]
    %v772 = vld [vmem:[%s3 + $0x8] sm:$0xf]
    %v773 = vld [vmem:[%s3 + $0xc] sm:$0xf]
    %v774 = vld [vmem:[%s3 + $0x10] sm:$0xf]
    %v775 = vld [vmem:[%s3 + $0x14] sm:$0xf]
    %v776 = vld [vmem:[%s3 + $0x18] sm:$0xf]
    %v777 = vld [vmem:[%s3 + $0x1c] sm:$0xf]
    %v778 = vld [vmem:[%s3 + $0x20] sm:$0xf]
    %v779 = vld [vmem:[%s3 + $0x24] sm:$0xf]
    %v780 = vld [vmem:[%s3 + $0x28] sm:$0xf]
    %v781 = vld [vmem:[%s3 + $0x2c] sm:$0xf]
    %v782 = vld [vmem:[%s3 + $0x30] sm:$0xf]
    %v783 = vld [vmem:[%s3 + $0x34] sm:$0xf]
    %v784 = vld [vmem:[%s3 + $0x38] sm:$0xf]
    %v785 = vld [vmem:[%s3 + $0x3c] sm:$0xf]
    %v786 = vld [vmem:[#allocation5] sm:$0x1]
    %v788 = vlaneseq
    %v789 = vshrl.u32 %v788, 7
    %v790 = vsub.s32 0, %v789
    %v791 = vrot.slane %v786, %v790
    %v809 = vunpack.c.l.b16 %v770
    %v810 = vunpack.c.l.b16 %v771
    %v811 = vunpack.c.l.b16 %v772
    %v812 = vunpack.c.l.b16 %v773
    %v813 = vunpack.c.l.b16 %v774
    %v814 = vunpack.c.l.b16 %v775
    %v815 = vunpack.c.l.b16 %v776
    %v816 = vunpack.c.l.b16 %v777
    %v817 = vunpack.c.l.b16 %v778
    %v818 = vunpack.c.l.b16 %v779
    %v819 = vunpack.c.l.b16 %v780
    %v820 = vunpack.c.l.b16 %v781
    %v821 = vunpack.c.l.b16 %v782
    %v822 = vunpack.c.l.b16 %v783
    %v823 = vunpack.c.l.b16 %v784
    %v824 = vunpack.c.l.b16 %v785
    %v825 = vpack.c.b16 %v810, %v809
    %v826 = vpack.c.b16 %v812, %v811
    %v827 = vpack.c.b16 %v814, %v813
    %v828 = vpack.c.b16 %v816, %v815
    %v829 = vpack.c.b16 %v818, %v817
    %v830 = vpack.c.b16 %v820, %v819
    %v831 = vpack.c.b16 %v822, %v821
    %v832 = vpack.c.b16 %v824, %v823
    %841 = vmatprep.subr.bf16.mxu0 0
    %842 = vmatpush1.bf16.msra.mxu0 %v832
    %843 = vmatprep.subr.bf16.mxu0 0
    %844 = vmatpush1.bf16.msra.mxu0 %v831
    %845 = vmatprep.subr.bf16.mxu0 0
    %846 = vmatpush1.bf16.msra.mxu0 %v830
    %847 = vmatprep.subr.bf16.mxu0 0
    %848 = vmatpush1.bf16.msra.mxu0 %v829
    %849 = vmatprep.subr.bf16.mxu0 0
    %850 = vmatpush1.bf16.msra.mxu0 %v828
    %851 = vmatprep.subr.bf16.mxu0 0
    %852 = vmatpush1.bf16.msra.mxu0 %v827
    %853 = vmatprep.subr.bf16.mxu0 0
    %854 = vmatpush1.bf16.msra.mxu0 %v826
    %855 = vmatprep.subr.bf16.mxu0 0
    %856 = vmatpush1.bf16.msra.mxu0 %v825
    %857 = vmatprep.subr.bf16.mxu0 0
    %858 = vmatpush2.bf16.msra.mxu0 0
    %859 = vmatprep.subr.bf16.mxu0 0
    %860 = vmatpush2.bf16.msra.mxu0 0
    %861 = vmatprep.subr.bf16.mxu0 0
    %862 = vmatpush2.bf16.msra.mxu0 0
    %863 = vmatprep.subr.bf16.mxu0 0
    %864 = vmatpush2.bf16.msra.mxu0 0
    %865 = vmatprep.subr.bf16.mxu0 0
    %866 = vmatpush2.bf16.msra.mxu0 0
    %867 = vmatprep.subr.bf16.mxu0 0
    %868 = vmatpush2.bf16.msra.mxu0 0
    %869 = vmatprep.subr.bf16.mxu0 0
    %870 = vmatpush2.bf16.msra.mxu0 0
    %871 = vmatprep.subr.bf16.mxu0 0
    %872 = vmatpush2.bf16.msra.mxu0 0
    %873 = vmatprep.mubr.bf16.mxu0 0
    %874 = vmatmul.mubr.bf16.gmra.mxu0 %v769
    %v875 = vpop.f32.mrf.mxu0
    %v876 = vadd.f32 %v791, %v875
    %v877 = vpop.f32.mrf.mxu0
    %v878 = vpop.f32.mrf.mxu0
    %v879 = vpop.f32.mrf.mxu0
    %880 = vdwg.mxu0
    %v881 = vpack.c.bf16 %v876, %v876
    %v882 = vld [vmem:[%s5] sm:$0xf]
    %v883 = vld [vmem:[%s5 + $0x4] sm:$0xf]
    %v884 = vld [vmem:[%s5 + $0x8] sm:$0xf]
    %v885 = vld [vmem:[%s5 + $0xc] sm:$0xf]
    %v886 = vld [vmem:[%s5 + $0x10] sm:$0xf]
    %v887 = vld [vmem:[%s5 + $0x14] sm:$0xf]
    %v888 = vld [vmem:[%s5 + $0x18] sm:$0xf]
    %v889 = vld [vmem:[%s5 + $0x1c] sm:$0xf]
    %v890 = vld [vmem:[%s6] sm:$0x1]
    %v892 = vlaneseq
    %v893 = vshrl.u32 %v892, 7
    %v894 = vsub.s32 0, %v893
    %v895 = vrot.slane %v890, %v894
    %v905 = vunpack.c.l.b16 %v882
    %v906 = vunpack.c.l.b16 %v883
    %v907 = vunpack.c.l.b16 %v884
    %v908 = vunpack.c.l.b16 %v885
    %v909 = vunpack.c.l.b16 %v886
    %v910 = vunpack.c.l.b16 %v887
    %v911 = vunpack.c.l.b16 %v888
    %v912 = vunpack.c.l.b16 %v889
    %v913 = vpack.c.b16 %v906, %v905
    %v914 = vpack.c.b16 %v908, %v907
    %v915 = vpack.c.b16 %v910, %v909
    %v916 = vpack.c.b16 %v912, %v911
    %vm921 = vcmask 523264
    %v923 = vsel %vm921, %v881, 0
    %925 = vmatprep.subr.bf16.mxu0 0
    %926 = vmatpush1.bf16.msra.mxu0 0
    %927 = vmatprep.subr.bf16.mxu0 0
    %928 = vmatpush1.bf16.msra.mxu0 0
    %929 = vmatprep.subr.bf16.mxu0 0
    %930 = vmatpush1.bf16.msra.mxu0 0
    %931 = vmatprep.subr.bf16.mxu0 0
    %932 = vmatpush1.bf16.msra.mxu0 0
    %933 = vmatprep.subr.bf16.mxu0 0
    %934 = vmatpush1.bf16.msra.mxu0 %v916
    %935 = vmatprep.subr.bf16.mxu0 0
    %936 = vmatpush1.bf16.msra.mxu0 %v915
    %937 = vmatprep.subr.bf16.mxu0 0
    %938 = vmatpush1.bf16.msra.mxu0 %v914
    %939 = vmatprep.subr.bf16.mxu0 0
    %940 = vmatpush1.bf16.msra.mxu0 %v913
    %941 = vmatprep.subr.bf16.mxu0 0
    %942 = vmatpush2.bf16.msra.mxu0 0
    %943 = vmatprep.subr.bf16.mxu0 0
    %944 = vmatpush2.bf16.msra.mxu0 0
    %945 = vmatprep.subr.bf16.mxu0 0
    %946 = vmatpush2.bf16.msra.mxu0 0
    %947 = vmatprep.subr.bf16.mxu0 0
    %948 = vmatpush2.bf16.msra.mxu0 0
    %949 = vmatprep.subr.bf16.mxu0 0
    %950 = vmatpush2.bf16.msra.mxu0 0
    %951 = vmatprep.subr.bf16.mxu0 0
    %952 = vmatpush2.bf16.msra.mxu0 0
    %953 = vmatprep.subr.bf16.mxu0 0
    %954 = vmatpush2.bf16.msra.mxu0 0
    %955 = vmatprep.subr.bf16.mxu0 0
    %956 = vmatpush2.bf16.msra.mxu0 0
    %957 = vmatprep.mubr.bf16.mxu0 0
    %958 = vmatmul.mubr.bf16.gmra.mxu0 %v923
    %v959 = vpop.f32.mrf.mxu0
    %v960 = vadd.f32 %v895, %v959
    %v961 = vpop.f32.mrf.mxu0
    %v962 = vpop.f32.mrf.mxu0
    %v963 = vpop.f32.mrf.mxu0
    %964 = vdwg.mxu0
    %v965 = vmax.f32 %v960, 0.0
    %v966 = vpack.c.bf16 %v965, %v965
    %v967 = vld [vmem:[#allocation7] sm:$0xff]
    %v968 = vld [vmem:[#allocation7 + $0x8] sm:$0xff]
    %v969 = vld [vmem:[#allocation7 + $0x10] sm:$0xff]
    %v970 = vld [vmem:[#allocation7 + $0x18] sm:$0xff]
    %v971 = vld [vmem:[#allocation7 + $0x20] sm:$0xff]
    %v972 = vld [vmem:[#allocation7 + $0x28] sm:$0xff]
    %v973 = vld [vmem:[#allocation7 + $0x30] sm:$0xff]
    %v974 = vld [vmem:[#allocation7 + $0x38] sm:$0xff]
    %v975 = vld [vmem:[#allocation7 + $0x40] sm:$0xff]
    %v976 = vld [vmem:[#allocation7 + $0x48] sm:$0xff]
    %v977 = vld [vmem:[#allocation7 + $0x50] sm:$0xff]
    %v978 = vld [vmem:[#allocation7 + $0x58] sm:$0xff]
    %v979 = vld [vmem:[#allocation7 + $0x60] sm:$0xff]
    %v980 = vld [vmem:[#allocation7 + $0x68] sm:$0xff]
    %v981 = vld [vmem:[#allocation7 + $0x70] sm:$0xff]
    %v982 = vld [vmem:[#allocation7 + $0x78] sm:$0xff]
    %v983 = vld [vmem:[#allocation7 + $0x80] sm:$0xff]
    %v984 = vld [vmem:[#allocation7 + $0x88] sm:$0xff]
    %v985 = vld [vmem:[#allocation7 + $0x90] sm:$0xff]
    %v986 = vld [vmem:[#allocation7 + $0x98] sm:$0xff]
    %v987 = vld [vmem:[#allocation7 + $0xa0] sm:$0xff]
    %v988 = vld [vmem:[#allocation7 + $0xa8] sm:$0xff]
    %v989 = vld [vmem:[#allocation7 + $0xb0] sm:$0xff]
    %v990 = vld [vmem:[#allocation7 + $0xb8] sm:$0xff]
    %v991 = vld [vmem:[#allocation7 + $0xc0] sm:$0xff]
    %v992 = vld [vmem:[#allocation7 + $0xc8] sm:$0xff]
    %v993 = vld [vmem:[#allocation7 + $0xd0] sm:$0xff]
    %v994 = vld [vmem:[#allocation7 + $0xd8] sm:$0xff]
    %v995 = vld [vmem:[#allocation7 + $0xe0] sm:$0xff]
    %v996 = vld [vmem:[#allocation7 + $0xe8] sm:$0xff]
    %v997 = vld [vmem:[#allocation7 + $0xf0] sm:$0xff]
    %v998 = vld [vmem:[#allocation7 + $0xf8] sm:$0xff]
    %v999 = vld [vmem:[#allocation7 + $0x100] sm:$0xff]
    %v1000 = vld [vmem:[#allocation7 + $0x108] sm:$0xff]
    %v1001 = vld [vmem:[#allocation7 + $0x110] sm:$0xff]
    %v1002 = vld [vmem:[#allocation7 + $0x118] sm:$0xff]
    %v1003 = vld [vmem:[#allocation7 + $0x120] sm:$0xff]
    %v1004 = vld [vmem:[#allocation7 + $0x128] sm:$0xff]
    %v1005 = vld [vmem:[#allocation7 + $0x130] sm:$0xff]
    %v1006 = vld [vmem:[#allocation7 + $0x138] sm:$0xff]
    %v1007 = vld [vmem:[#allocation7 + $0x140] sm:$0xff]
    %v1008 = vld [vmem:[#allocation7 + $0x148] sm:$0xff]
    %v1009 = vld [vmem:[#allocation7 + $0x150] sm:$0xff]
    %v1010 = vld [vmem:[#allocation7 + $0x158] sm:$0xff]
    %v1011 = vld [vmem:[#allocation7 + $0x160] sm:$0xff]
    %v1012 = vld [vmem:[#allocation7 + $0x168] sm:$0xff]
    %v1013 = vld [vmem:[#allocation7 + $0x170] sm:$0xff]
    %v1014 = vld [vmem:[#allocation7 + $0x178] sm:$0xff]
    %v1015 = vld [vmem:[#allocation7 + $0x180] sm:$0xff]
    %v1016 = vld [vmem:[#allocation7 + $0x188] sm:$0xff]
    %v1017 = vld [vmem:[#allocation7 + $0x190] sm:$0xff]
    %v1018 = vld [vmem:[#allocation7 + $0x198] sm:$0xff]
    %v1019 = vld [vmem:[#allocation7 + $0x1a0] sm:$0xff]
    %v1020 = vld [vmem:[#allocation7 + $0x1a8] sm:$0xff]
    %v1021 = vld [vmem:[#allocation7 + $0x1b0] sm:$0xff]
    %v1022 = vld [vmem:[#allocation7 + $0x1b8] sm:$0xff]
    %v1023 = vld [vmem:[#allocation7 + $0x1c0] sm:$0xff]
    %v1024 = vld [vmem:[#allocation7 + $0x1c8] sm:$0xff]
    %v1025 = vld [vmem:[#allocation7 + $0x1d0] sm:$0xff]
    %v1026 = vld [vmem:[#allocation7 + $0x1d8] sm:$0xff]
    %v1027 = vld [vmem:[#allocation7 + $0x1e0] sm:$0xff]
    %v1028 = vld [vmem:[#allocation7 + $0x1e8] sm:$0xff]
    %v1029 = vld [vmem:[#allocation7 + $0x1f0] sm:$0xff]
    %v1030 = vld [vmem:[#allocation7 + $0x1f8] sm:$0xff]
    %v1031 = vld [vmem:[%s8] sm:$0xff]
    %v1033 = vlaneseq
    %v1034 = vshrl.u32 %v1033, 7
    %v1035 = vsub.s32 0, %v1034
    %v1036 = vrot.slane %v1031, %v1035
    %v1037 = vlaneseq
    %v1038 = vshrl.u32 %v1037, 7
    %v1039 = vsub.s32 1, %v1038
    %v1040 = vrot.slane %v1031, %v1039
    %v1041 = vlaneseq
    %v1042 = vshrl.u32 %v1041, 7
    %v1043 = vsub.s32 2, %v1042
    %v1044 = vrot.slane %v1031, %v1043
    %v1045 = vlaneseq
    %v1046 = vshrl.u32 %v1045, 7
    %v1047 = vsub.s32 3, %v1046
    %v1048 = vrot.slane %v1031, %v1047
    %v1049 = vlaneseq
    %v1050 = vshrl.u32 %v1049, 7
    %v1051 = vsub.s32 4, %v1050
    %v1052 = vrot.slane %v1031, %v1051
    %v1053 = vlaneseq
    %v1054 = vshrl.u32 %v1053, 7
    %v1055 = vsub.s32 5, %v1054
    %v1056 = vrot.slane %v1031, %v1055
    %v1057 = vlaneseq
    %v1058 = vshrl.u32 %v1057, 7
    %v1059 = vsub.s32 6, %v1058
    %v1060 = vrot.slane %v1031, %v1059
    %v1061 = vlaneseq
    %v1062 = vshrl.u32 %v1061, 7
    %v1063 = vsub.s32 7, %v1062
    %v1064 = vrot.slane %v1031, %v1063
    %v1137 = vunpack.c.l.b16 %v967
    %v1138 = vunpack.c.h.b16 %v967
    %v1139 = vunpack.c.l.b16 %v968
    %v1140 = vunpack.c.h.b16 %v968
    %v1141 = vunpack.c.l.b16 %v969
    %v1142 = vunpack.c.h.b16 %v969
    %v1143 = vunpack.c.l.b16 %v970
    %v1144 = vunpack.c.h.b16 %v970
    %v1145 = vunpack.c.l.b16 %v971
    %v1146 = vunpack.c.h.b16 %v971
    %v1147 = vunpack.c.l.b16 %v972
    %v1148 = vunpack.c.h.b16 %v972
    %v1149 = vunpack.c.l.b16 %v973
    %v1150 = vunpack.c.h.b16 %v973
    %v1151 = vunpack.c.l.b16 %v974
    %v1152 = vunpack.c.h.b16 %v974
    %v1153 = vunpack.c.l.b16 %v975
    %v1154 = vunpack.c.h.b16 %v975
    %v1155 = vunpack.c.l.b16 %v976
    %v1156 = vunpack.c.h.b16 %v976
    %v1157 = vunpack.c.l.b16 %v977
    %v1158 = vunpack.c.h.b16 %v977
    %v1159 = vunpack.c.l.b16 %v978
    %v1160 = vunpack.c.h.b16 %v978
    %v1161 = vunpack.c.l.b16 %v979
    %v1162 = vunpack.c.h.b16 %v979
    %v1163 = vunpack.c.l.b16 %v980
    %v1164 = vunpack.c.h.b16 %v980
    %v1165 = vunpack.c.l.b16 %v981
    %v1166 = vunpack.c.h.b16 %v981
    %v1167 = vunpack.c.l.b16 %v982
    %v1168 = vunpack.c.h.b16 %v982
    %v1169 = vunpack.c.l.b16 %v983
    %v1170 = vunpack.c.h.b16 %v983
    %v1171 = vunpack.c.l.b16 %v984
    %v1172 = vunpack.c.h.b16 %v984
    %v1173 = vunpack.c.l.b16 %v985
    %v1174 = vunpack.c.h.b16 %v985
    %v1175 = vunpack.c.l.b16 %v986
    %v1176 = vunpack.c.h.b16 %v986
    %v1177 = vunpack.c.l.b16 %v987
    %v1178 = vunpack.c.h.b16 %v987
    %v1179 = vunpack.c.l.b16 %v988
    %v1180 = vunpack.c.h.b16 %v988
    %v1181 = vunpack.c.l.b16 %v989
    %v1182 = vunpack.c.h.b16 %v989
    %v1183 = vunpack.c.l.b16 %v990
    %v1184 = vunpack.c.h.b16 %v990
    %v1185 = vunpack.c.l.b16 %v991
    %v1186 = vunpack.c.h.b16 %v991
    %v1187 = vunpack.c.l.b16 %v992
    %v1188 = vunpack.c.h.b16 %v992
    %v1189 = vunpack.c.l.b16 %v993
    %v1190 = vunpack.c.h.b16 %v993
    %v1191 = vunpack.c.l.b16 %v994
    %v1192 = vunpack.c.h.b16 %v994
    %v1193 = vunpack.c.l.b16 %v995
    %v1194 = vunpack.c.h.b16 %v995
    %v1195 = vunpack.c.l.b16 %v996
    %v1196 = vunpack.c.h.b16 %v996
    %v1197 = vunpack.c.l.b16 %v997
    %v1198 = vunpack.c.h.b16 %v997
    %v1199 = vunpack.c.l.b16 %v998
    %v1200 = vunpack.c.h.b16 %v998
    %v1201 = vunpack.c.l.b16 %v999
    %v1202 = vunpack.c.h.b16 %v999
    %v1203 = vunpack.c.l.b16 %v1000
    %v1204 = vunpack.c.h.b16 %v1000
    %v1205 = vunpack.c.l.b16 %v1001
    %v1206 = vunpack.c.h.b16 %v1001
    %v1207 = vunpack.c.l.b16 %v1002
    %v1208 = vunpack.c.h.b16 %v1002
    %v1209 = vunpack.c.l.b16 %v1003
    %v1210 = vunpack.c.h.b16 %v1003
    %v1211 = vunpack.c.l.b16 %v1004
    %v1212 = vunpack.c.h.b16 %v1004
    %v1213 = vunpack.c.l.b16 %v1005
    %v1214 = vunpack.c.h.b16 %v1005
    %v1215 = vunpack.c.l.b16 %v1006
    %v1216 = vunpack.c.h.b16 %v1006
    %v1217 = vunpack.c.l.b16 %v1007
    %v1218 = vunpack.c.h.b16 %v1007
    %v1219 = vunpack.c.l.b16 %v1008
    %v1220 = vunpack.c.h.b16 %v1008
    %v1221 = vunpack.c.l.b16 %v1009
    %v1222 = vunpack.c.h.b16 %v1009
    %v1223 = vunpack.c.l.b16 %v1010
    %v1224 = vunpack.c.h.b16 %v1010
    %v1225 = vunpack.c.l.b16 %v1011
    %v1226 = vunpack.c.h.b16 %v1011
    %v1227 = vunpack.c.l.b16 %v1012
    %v1228 = vunpack.c.h.b16 %v1012
    %v1229 = vunpack.c.l.b16 %v1013
    %v1230 = vunpack.c.h.b16 %v1013
    %v1231 = vunpack.c.l.b16 %v1014
    %v1232 = vunpack.c.h.b16 %v1014
    %v1233 = vunpack.c.l.b16 %v1015
    %v1234 = vunpack.c.h.b16 %v1015
    %v1235 = vunpack.c.l.b16 %v1016
    %v1236 = vunpack.c.h.b16 %v1016
    %v1237 = vunpack.c.l.b16 %v1017
    %v1238 = vunpack.c.h.b16 %v1017
    %v1239 = vunpack.c.l.b16 %v1018
    %v1240 = vunpack.c.h.b16 %v1018
    %v1241 = vunpack.c.l.b16 %v1019
    %v1242 = vunpack.c.h.b16 %v1019
    %v1243 = vunpack.c.l.b16 %v1020
    %v1244 = vunpack.c.h.b16 %v1020
    %v1245 = vunpack.c.l.b16 %v1021
    %v1246 = vunpack.c.h.b16 %v1021
    %v1247 = vunpack.c.l.b16 %v1022
    %v1248 = vunpack.c.h.b16 %v1022
    %v1249 = vunpack.c.l.b16 %v1023
    %v1250 = vunpack.c.h.b16 %v1023
    %v1251 = vunpack.c.l.b16 %v1024
    %v1252 = vunpack.c.h.b16 %v1024
    %v1253 = vunpack.c.l.b16 %v1025
    %v1254 = vunpack.c.h.b16 %v1025
    %v1255 = vunpack.c.l.b16 %v1026
    %v1256 = vunpack.c.h.b16 %v1026
    %v1257 = vunpack.c.l.b16 %v1027
    %v1258 = vunpack.c.h.b16 %v1027
    %v1259 = vunpack.c.l.b16 %v1028
    %v1260 = vunpack.c.h.b16 %v1028
    %v1261 = vunpack.c.l.b16 %v1029
    %v1262 = vunpack.c.h.b16 %v1029
    %v1263 = vunpack.c.l.b16 %v1030
    %v1264 = vunpack.c.h.b16 %v1030
    %v1265 = vpack.c.b16 %v1145, %v1137
    %v1266 = vpack.c.b16 %v1146, %v1138
    %v1267 = vpack.c.b16 %v1147, %v1139
    %v1268 = vpack.c.b16 %v1148, %v1140
    %v1269 = vpack.c.b16 %v1149, %v1141
    %v1270 = vpack.c.b16 %v1150, %v1142
    %v1271 = vpack.c.b16 %v1151, %v1143
    %v1272 = vpack.c.b16 %v1152, %v1144
    %v1273 = vpack.c.b16 %v1161, %v1153
    %v1274 = vpack.c.b16 %v1162, %v1154
    %v1275 = vpack.c.b16 %v1163, %v1155
    %v1276 = vpack.c.b16 %v1164, %v1156
    %v1277 = vpack.c.b16 %v1165, %v1157
    %v1278 = vpack.c.b16 %v1166, %v1158
    %v1279 = vpack.c.b16 %v1167, %v1159
    %v1280 = vpack.c.b16 %v1168, %v1160
    %v1281 = vpack.c.b16 %v1177, %v1169
    %v1282 = vpack.c.b16 %v1178, %v1170
    %v1283 = vpack.c.b16 %v1179, %v1171
    %v1284 = vpack.c.b16 %v1180, %v1172
    %v1285 = vpack.c.b16 %v1181, %v1173
    %v1286 = vpack.c.b16 %v1182, %v1174
    %v1287 = vpack.c.b16 %v1183, %v1175
    %v1288 = vpack.c.b16 %v1184, %v1176
    %v1289 = vpack.c.b16 %v1193, %v1185
    %v1290 = vpack.c.b16 %v1194, %v1186
    %v1291 = vpack.c.b16 %v1195, %v1187
    %v1292 = vpack.c.b16 %v1196, %v1188
    %v1293 = vpack.c.b16 %v1197, %v1189
    %v1294 = vpack.c.b16 %v1198, %v1190
    %v1295 = vpack.c.b16 %v1199, %v1191
    %v1296 = vpack.c.b16 %v1200, %v1192
    %v1297 = vpack.c.b16 %v1209, %v1201
    %v1298 = vpack.c.b16 %v1210, %v1202
    %v1299 = vpack.c.b16 %v1211, %v1203
    %v1300 = vpack.c.b16 %v1212, %v1204
    %v1301 = vpack.c.b16 %v1213, %v1205
    %v1302 = vpack.c.b16 %v1214, %v1206
    %v1303 = vpack.c.b16 %v1215, %v1207
    %v1304 = vpack.c.b16 %v1216, %v1208
    %v1305 = vpack.c.b16 %v1225, %v1217
    %v1306 = vpack.c.b16 %v1226, %v1218
    %v1307 = vpack.c.b16 %v1227, %v1219
    %v1308 = vpack.c.b16 %v1228, %v1220
    %v1309 = vpack.c.b16 %v1229, %v1221
    %v1310 = vpack.c.b16 %v1230, %v1222
    %v1311 = vpack.c.b16 %v1231, %v1223
    %v1312 = vpack.c.b16 %v1232, %v1224
    %v1313 = vpack.c.b16 %v1241, %v1233
    %v1314 = vpack.c.b16 %v1242, %v1234
    %v1315 = vpack.c.b16 %v1243, %v1235
    %v1316 = vpack.c.b16 %v1244, %v1236
    %v1317 = vpack.c.b16 %v1245, %v1237
    %v1318 = vpack.c.b16 %v1246, %v1238
    %v1319 = vpack.c.b16 %v1247, %v1239
    %v1320 = vpack.c.b16 %v1248, %v1240
    %v1321 = vpack.c.b16 %v1257, %v1249
    %v1322 = vpack.c.b16 %v1258, %v1250
    %v1323 = vpack.c.b16 %v1259, %v1251
    %v1324 = vpack.c.b16 %v1260, %v1252
    %v1325 = vpack.c.b16 %v1261, %v1253
    %v1326 = vpack.c.b16 %v1262, %v1254
    %v1327 = vpack.c.b16 %v1263, %v1255
    %v1328 = vpack.c.b16 %v1264, %v1256
    %1393 = vmatprep.subr.bf16.mxu0 %v1322
    %1394 = vmatpush1.bf16.msra.mxu0 %v1321
    %1395 = vmatprep.subr.bf16.mxu0 %v1314
    %1396 = vmatpush1.bf16.msra.mxu0 %v1313
    %1397 = vmatprep.subr.bf16.mxu0 %v1306
    %1398 = vmatpush1.bf16.msra.mxu0 %v1305
    %1399 = vmatprep.subr.bf16.mxu0 %v1298
    %1400 = vmatpush1.bf16.msra.mxu0 %v1297
    %1401 = vmatprep.subr.bf16.mxu0 %v1290
    %1402 = vmatpush1.bf16.msra.mxu0 %v1289
    %1403 = vmatprep.subr.bf16.mxu0 %v1282
    %1404 = vmatpush1.bf16.msra.mxu0 %v1281
    %1405 = vmatprep.subr.bf16.mxu0 %v1274
    %1406 = vmatpush1.bf16.msra.mxu0 %v1273
    %1407 = vmatprep.subr.bf16.mxu0 %v1266
    %1408 = vmatpush1.bf16.msra.mxu0 %v1265
    %1409 = vmatprep.subr.bf16.mxu0 0
    %1410 = vmatpush2.bf16.msra.mxu0 0
    %1411 = vmatprep.subr.bf16.mxu0 0
    %1412 = vmatpush2.bf16.msra.mxu0 0
    %1413 = vmatprep.subr.bf16.mxu0 0
    %1414 = vmatpush2.bf16.msra.mxu0 0
    %1415 = vmatprep.subr.bf16.mxu0 0
    %1416 = vmatpush2.bf16.msra.mxu0 0
    %1417 = vmatprep.subr.bf16.mxu0 0
    %1418 = vmatpush2.bf16.msra.mxu0 0
    %1419 = vmatprep.subr.bf16.mxu0 0
    %1420 = vmatpush2.bf16.msra.mxu0 0
    %1421 = vmatprep.subr.bf16.mxu0 0
    %1422 = vmatpush2.bf16.msra.mxu0 0
    %1423 = vmatprep.subr.bf16.mxu0 0
    %1424 = vmatpush2.bf16.msra.mxu0 0
    %1425 = vmatprep.mubr.bf16.mxu0 0
    %1426 = vmatmul.mubr.bf16.gmra.mxu0 %v966
    %v1427 = vpop.f32.mrf.mxu0
    %v1428 = vadd.f32 %v1036, %v1427
    %v1429 = vpop.f32.mrf.mxu0
    %v1430 = vadd.f32 %v1040, %v1429
    %v1431 = vpop.f32.mrf.mxu0
    %v1432 = vpop.f32.mrf.mxu0
    %1433 = vdwg.mxu0
    %1434 = vmatprep.subr.bf16.mxu0 %v1324
    %1435 = vmatpush1.bf16.msra.mxu0 %v1323
    %1436 = vmatprep.subr.bf16.mxu0 %v1316
    %1437 = vmatpush1.bf16.msra.mxu0 %v1315
    %1438 = vmatprep.subr.bf16.mxu0 %v1308
    %1439 = vmatpush1.bf16.msra.mxu0 %v1307
    %1440 = vmatprep.subr.bf16.mxu0 %v1300
    %1441 = vmatpush1.bf16.msra.mxu0 %v1299
    %1442 = vmatprep.subr.bf16.mxu0 %v1292
    %1443 = vmatpush1.bf16.msra.mxu0 %v1291
    %1444 = vmatprep.subr.bf16.mxu0 %v1284
    %1445 = vmatpush1.bf16.msra.mxu0 %v1283
    %1446 = vmatprep.subr.bf16.mxu0 %v1276
    %1447 = vmatpush1.bf16.msra.mxu0 %v1275
    %1448 = vmatprep.subr.bf16.mxu0 %v1268
    %1449 = vmatpush1.bf16.msra.mxu0 %v1267
    %1450 = vmatprep.subr.bf16.mxu0 0
    %1451 = vmatpush2.bf16.msra.mxu0 0
    %1452 = vmatprep.subr.bf16.mxu0 0
    %1453 = vmatpush2.bf16.msra.mxu0 0
    %1454 = vmatprep.subr.bf16.mxu0 0
    %1455 = vmatpush2.bf16.msra.mxu0 0
    %1456 = vmatprep.subr.bf16.mxu0 0
    %1457 = vmatpush2.bf16.msra.mxu0 0
    %1458 = vmatprep.subr.bf16.mxu0 0
    %1459 = vmatpush2.bf16.msra.mxu0 0
    %1460 = vmatprep.subr.bf16.mxu0 0
    %1461 = vmatpush2.bf16.msra.mxu0 0
    %1462 = vmatprep.subr.bf16.mxu0 0
    %1463 = vmatpush2.bf16.msra.mxu0 0
    %1464 = vmatprep.subr.bf16.mxu0 0
    %1465 = vmatpush2.bf16.msra.mxu0 0
    %1466 = vmatprep.mubr.bf16.mxu0 0
    %1467 = vmatmul.mubr.bf16.gmra.mxu0 %v966
    %v1468 = vpop.f32.mrf.mxu0
    %v1469 = vadd.f32 %v1044, %v1468
    %v1470 = vpop.f32.mrf.mxu0
    %v1471 = vadd.f32 %v1048, %v1470
    %v1472 = vpop.f32.mrf.mxu0
    %v1473 = vpop.f32.mrf.mxu0
    %1474 = vdwg.mxu0
    %1475 = vmatprep.subr.bf16.mxu0 %v1326
    %1476 = vmatpush1.bf16.msra.mxu0 %v1325
    %1477 = vmatprep.subr.bf16.mxu0 %v1318
    %1478 = vmatpush1.bf16.msra.mxu0 %v1317
    %1479 = vmatprep.subr.bf16.mxu0 %v1310
    %1480 = vmatpush1.bf16.msra.mxu0 %v1309
    %1481 = vmatprep.subr.bf16.mxu0 %v1302
    %1482 = vmatpush1.bf16.msra.mxu0 %v1301
    %1483 = vmatprep.subr.bf16.mxu0 %v1294
    %1484 = vmatpush1.bf16.msra.mxu0 %v1293
    %1485 = vmatprep.subr.bf16.mxu0 %v1286
    %1486 = vmatpush1.bf16.msra.mxu0 %v1285
    %1487 = vmatprep.subr.bf16.mxu0 %v1278
    %1488 = vmatpush1.bf16.msra.mxu0 %v1277
    %1489 = vmatprep.subr.bf16.mxu0 %v1270
    %1490 = vmatpush1.bf16.msra.mxu0 %v1269
    %1491 = vmatprep.subr.bf16.mxu0 0
    %1492 = vmatpush2.bf16.msra.mxu0 0
    %1493 = vmatprep.subr.bf16.mxu0 0
    %1494 = vmatpush2.bf16.msra.mxu0 0
    %1495 = vmatprep.subr.bf16.mxu0 0
    %1496 = vmatpush2.bf16.msra.mxu0 0
    %1497 = vmatprep.subr.bf16.mxu0 0
    %1498 = vmatpush2.bf16.msra.mxu0 0
    %1499 = vmatprep.subr.bf16.mxu0 0
    %1500 = vmatpush2.bf16.msra.mxu0 0
    %1501 = vmatprep.subr.bf16.mxu0 0
    %1502 = vmatpush2.bf16.msra.mxu0 0
    %1503 = vmatprep.subr.bf16.mxu0 0
    %1504 = vmatpush2.bf16.msra.mxu0 0
    %1505 = vmatprep.subr.bf16.mxu0 0
    %1506 = vmatpush2.bf16.msra.mxu0 0
    %1507 = vmatprep.mubr.bf16.mxu0 0
    %1508 = vmatmul.mubr.bf16.gmra.mxu0 %v966
    %v1509 = vpop.f32.mrf.mxu0
    %v1510 = vadd.f32 %v1052, %v1509
    %v1511 = vpop.f32.mrf.mxu0
    %v1512 = vadd.f32 %v1056, %v1511
    %v1513 = vpop.f32.mrf.mxu0
    %v1514 = vpop.f32.mrf.mxu0
    %1515 = vdwg.mxu0
    %1516 = vmatprep.subr.bf16.mxu0 %v1328
    %1517 = vmatpush1.bf16.msra.mxu0 %v1327
    %1518 = vmatprep.subr.bf16.mxu0 %v1320
    %1519 = vmatpush1.bf16.msra.mxu0 %v1319
    %1520 = vmatprep.subr.bf16.mxu0 %v1312
    %1521 = vmatpush1.bf16.msra.mxu0 %v1311
    %1522 = vmatprep.subr.bf16.mxu0 %v1304
    %1523 = vmatpush1.bf16.msra.mxu0 %v1303
    %1524 = vmatprep.subr.bf16.mxu0 %v1296
    %1525 = vmatpush1.bf16.msra.mxu0 %v1295
    %1526 = vmatprep.subr.bf16.mxu0 %v1288
    %1527 = vmatpush1.bf16.msra.mxu0 %v1287
    %1528 = vmatprep.subr.bf16.mxu0 %v1280
    %1529 = vmatpush1.bf16.msra.mxu0 %v1279
    %1530 = vmatprep.subr.bf16.mxu0 %v1272
    %1531 = vmatpush1.bf16.msra.mxu0 %v1271
    %1532 = vmatprep.subr.bf16.mxu0 0
    %1533 = vmatpush2.bf16.msra.mxu0 0
    %1534 = vmatprep.subr.bf16.mxu0 0
    %1535 = vmatpush2.bf16.msra.mxu0 0
    %1536 = vmatprep.subr.bf16.mxu0 0
    %1537 = vmatpush2.bf16.msra.mxu0 0
    %1538 = vmatprep.subr.bf16.mxu0 0
    %1539 = vmatpush2.bf16.msra.mxu0 0
    %1540 = vmatprep.subr.bf16.mxu0 0
    %1541 = vmatpush2.bf16.msra.mxu0 0
    %1542 = vmatprep.subr.bf16.mxu0 0
    %1543 = vmatpush2.bf16.msra.mxu0 0
    %1544 = vmatprep.subr.bf16.mxu0 0
    %1545 = vmatpush2.bf16.msra.mxu0 0
    %1546 = vmatprep.subr.bf16.mxu0 0
    %1547 = vmatpush2.bf16.msra.mxu0 0
    %1548 = vmatprep.mubr.bf16.mxu0 0
    %1549 = vmatmul.mubr.bf16.gmra.mxu0 %v966
    %v1550 = vpop.f32.mrf.mxu0
    %v1551 = vadd.f32 %v1060, %v1550
    %v1552 = vpop.f32.mrf.mxu0
    %v1553 = vadd.f32 %v1064, %v1552
    %v1554 = vpop.f32.mrf.mxu0
    %v1555 = vpop.f32.mrf.mxu0
    %1556 = vdwg.mxu0
    %v1557 = vlaneseq
    %v1558 = vshrl.u32 %v1557, 7
    %s1559 = smul.u32 0, 8
    %v1560 = vstv %s1559
    %v1561 = vadd.s32 %v1558, %v1560
    %vm1562 = vcmp.lt.s32.totalorder %v1561, 2
    %v1563 = vlaneseq
    %v1564 = vand.u32 %v1563, 127
    %vm1565 = vcmp.lt.s32.totalorder %v1564, 32
    %v1566 = vmul.f32 %v876, 0.5
    %v1567 = vmul.f32 %v1566, %v876
    %v1568 = vmul.f32 %v876, 2.0
    %v1569 = vmul.f32 %v1568, 1.442695
    %v1570 = vpow.pop %v1569
    %v1571 = vsub.f32 %v1570, 1.0
    %v1572 = vsub.f32 %v1571, %v1568
    %v1573 = vmul.f32 %v1572, 0.5
    %v1574 = vsel %vm1565, %v1567, %v1573
    %v1575 = vsel %vm921, %v1574, 0.0
    %1576 = vadd.xlane.f32.xlu0 %v1575
    %v1577 = vpop.xlane.xlu0 %1576
    %v1578 = vsel %vm1562, %v1577, 0.0
    %vm1579 = vcmask 7168
    %v1580 = vsel %vm1579, %v1578, 0.0
    %1581 = vadd.xlane.f32.xlu0 %v1580
    %v1582 = vpop.xlane.xlu0 %1581
    %v1583 = vrot.slane %v1582, 4
    %v1584 = vadd.f32 %v1582, %v1583
    %v1585 = vrot.slane %v1584, 2
    %v1586 = vadd.f32 %v1584, %v1585
    %v1587 = vrot.slane %v1586, 1
    %v1588 = vadd.f32 %v1586, %v1587
    %s1589 = vtos %v1588
    %v1590 = vmax.f32 %v1428, 0.0
    %v1591 = vmax.f32 %v1430, 0.0
    %v1592 = vmax.f32 %v1469, 0.0
    %v1593 = vmax.f32 %v1471, 0.0
    %v1594 = vmax.f32 %v1510, 0.0
    %v1595 = vmax.f32 %v1512, 0.0
    %v1596 = vmax.f32 %v1551, 0.0
    %v1597 = vmax.f32 %v1553, 0.0
    %v1598 = vmul.f32 %v1428, %v73
    %v1599 = vmul.f32 %v1430, %v74
    %v1600 = vmul.f32 %v1469, %v75
    %v1601 = vmul.f32 %v1471, %v76
    %v1602 = vmul.f32 %v1510, %v77
    %v1603 = vmul.f32 %v1512, %v78
    %v1604 = vmul.f32 %v1551, %v79
    %v1605 = vmul.f32 %v1553, %v80
    %v1606 = vsub.f32 %v1590, %v1598
    %v1607 = vsub.f32 %v1591, %v1599
    %v1608 = vsub.f32 %v1592, %v1600
    %v1609 = vsub.f32 %v1593, %v1601
    %v1610 = vsub.f32 %v1594, %v1602
    %v1611 = vsub.f32 %v1595, %v1603
    %v1612 = vsub.f32 %v1596, %v1604
    %v1613 = vsub.f32 %v1597, %v1605
    %v1614 = vand.u32 2147483647, %v1428
    %v1615 = vand.u32 2147483647, %v1430
    %v1616 = vand.u32 2147483647, %v1469
    %v1617 = vand.u32 2147483647, %v1471
    %v1618 = vand.u32 2147483647, %v1510
    %v1619 = vand.u32 2147483647, %v1512
    %v1620 = vand.u32 2147483647, %v1551
    %v1621 = vand.u32 2147483647, %v1553
    %v1622 = vsub.f32 0.0, %v1614
    %v1623 = vsub.f32 0.0, %v1615
    %v1624 = vsub.f32 0.0, %v1616
    %v1625 = vsub.f32 0.0, %v1617
    %v1626 = vsub.f32 0.0, %v1618
    %v1627 = vsub.f32 0.0, %v1619
    %v1628 = vsub.f32 0.0, %v1620
    %v1629 = vsub.f32 0.0, %v1621
    %v1630 = vmul.f32 %v1622, 1.442695
    %v1631 = vpow.pop %v1630
    %v1632 = vmul.f32 %v1623, 1.442695
    %v1633 = vpow.pop %v1632
    %v1634 = vmul.f32 %v1624, 1.442695
    %v1635 = vpow.pop %v1634
    %v1636 = vmul.f32 %v1625, 1.442695
    %v1637 = vpow.pop %v1636
    %v1638 = vmul.f32 %v1626, 1.442695
    %v1639 = vpow.pop %v1638
    %v1640 = vmul.f32 %v1627, 1.442695
    %v1641 = vpow.pop %v1640
    %v1642 = vmul.f32 %v1628, 1.442695
    %v1643 = vpow.pop %v1642
    %v1644 = vmul.f32 %v1629, 1.442695
    %v1645 = vpow.pop %v1644
    %v1646 = vadd.f32 %v1631, 1.0
    %v1647 = vadd.f32 %v1633, 1.0
    %v1648 = vadd.f32 %v1635, 1.0
    %v1649 = vadd.f32 %v1637, 1.0
    %v1650 = vadd.f32 %v1639, 1.0
    %v1651 = vadd.f32 %v1641, 1.0
    %v1652 = vadd.f32 %v1643, 1.0
    %v1653 = vadd.f32 %v1645, 1.0
    %v1654 = vlog2.pop %v1646
    %v1655 = vmul.f32 %v1654, 0.6931472
    %v1656 = vlog2.pop %v1647
    %v1657 = vmul.f32 %v1656, 0.6931472
    %v1658 = vlog2.pop %v1648
    %v1659 = vmul.f32 %v1658, 0.6931472
    %v1660 = vlog2.pop %v1649
    %v1661 = vmul.f32 %v1660, 0.6931472
    %v1662 = vlog2.pop %v1650
    %v1663 = vmul.f32 %v1662, 0.6931472
    %v1664 = vlog2.pop %v1651
    %v1665 = vmul.f32 %v1664, 0.6931472
    %v1666 = vlog2.pop %v1652
    %v1667 = vmul.f32 %v1666, 0.6931472
    %v1668 = vlog2.pop %v1653
    %v1669 = vmul.f32 %v1668, 0.6931472
    %v1670 = vadd.f32 %v1606, %v1655
    %v1671 = vadd.f32 %v1607, %v1657
    %v1672 = vadd.f32 %v1608, %v1659
    %v1673 = vadd.f32 %v1609, %v1661
    %v1674 = vadd.f32 %v1610, %v1663
    %v1675 = vadd.f32 %v1611, %v1665
    %v1676 = vadd.f32 %v1612, %v1667
    %v1677 = vadd.f32 %v1613, %v1669
    %v1678 = vadd.f32 %v1670, %v1671
    %v1679 = vadd.f32 %v1678, %v1672
    %v1680 = vadd.f32 %v1679, %v1673
    %v1681 = vadd.f32 %v1680, %v1674
    %v1682 = vadd.f32 %v1681, %v1675
    %v1683 = vadd.f32 %v1682, %v1676
    %v1684 = vadd.f32 %v1683, %v1677
    %1685 = vadd.xlane.f32.xlu0 %v1684
    %v1686 = vpop.xlane.xlu0 %1685
    %v1687 = vsel %vm1562, %v1686, 0.0
    %v1688 = vsel %vm1579, %v1687, 0.0
    %1689 = vadd.xlane.f32.xlu0 %v1688
    %v1690 = vpop.xlane.xlu0 %1689
    %v1691 = vrot.slane %v1690, 4
    %v1692 = vadd.f32 %v1690, %v1691
    %v1693 = vrot.slane %v1692, 2
    %v1694 = vadd.f32 %v1692, %v1693
    %v1695 = vrot.slane %v1694, 1
    %v1696 = vadd.f32 %v1694, %v1695
    %s1697 = vtos %v1696
    %s1698 = smul.f32 %s1589, 4.0
    %s1699 = sadd.f32 %s1698, %s1697
    %s1700 = scalar_lea.smem [#allocation8], 0
    %1701 = sst [smem:[%s1700]] %s1699
    // Predicated region
    $region50: #{tpu_custom_call.1} parent=1 // pred_check
      _
    $region51: #{tpu_custom_call.1} parent=1 // pred_check_branch
      %1703 = sbr.rel (0) target = $region53
    $region52: #{tpu_custom_call.1} parent=1 // pred_region
      %s1705 = ssub.s32 16, 16
      %1706 = vsyncadd [#allocation4], %s1705
      %1709 = dma.smem_to_hbm [#allocation8], 16, %s9, [#allocation4]
    $region53: #{tpu_custom_call.1} parent=1 // pred_fallthru
      _
    // Predicated region
    $region54: #{tpu_custom_call.1} parent=1 // pred_check
      _
    $region55: #{tpu_custom_call.1} parent=1 // pred_check_branch
      %1711 = sbr.rel (0) target = $region57
    $region56: #{tpu_custom_call.1} parent=1 // pred_region
      %1712 = dma.done [#allocation4], 16
    $region57: #{tpu_custom_call.1} parent=1 // pred_fallthru
      _
    %1713 = sfence
    %1714 = vsyncpa [#allocation3], 1
    %1715 = vsyncpa [#allocation6], 1
    %1716 = vsyncpa [#allocation4], 1

</llo_original>
